<compile_context>
chip_gen: v6e
topology: v6e:2x2x1
jax: 0.10.0
libtpu: 0.0.40
codegen_flags: <defaults>
</compile_context>

<pallas_src>
import functools

import jax
import jax.numpy as jnp
from jax.experimental import pallas as pl
from jax.experimental.pallas import tpu as pltpu


def _round_up(x, m):
    return ((x + m - 1) // m) * m


def _tcn_fused_kernel(x_hbm, bias_ref, *refs, layers, K, TL, W, HALO, POFF, CpS):
    """Fused TCN forward for one (batch, L-tile) grid point.

    refs = per-layer weight refs (w1, w2[, wd]) ..., o_ref, pbuf, xwin.
    Layout: time on sublanes, channels (padded per-layer to a 128 multiple) on
    lanes.  `pbuf` is a (POFF + W, CpS) f32 staging scratch whose first POFF
    rows stay zero and implement the in-window causal left padding; `xwin` is
    the DMA landing buffer for the overlapping input window.
    """
    o_ref, pbuf, xwin = refs[-3], refs[-2], refs[-1]
    wrefs = refs[:-3]

    b = pl.program_id(0)
    ti = pl.program_id(1)

    # Fetch the overlapping input window (TL rows + cumulative-receptive-field
    # halo) for this grid point.  The wrapper front-padded the time axis with
    # HALO zero rows, so the window is always in-bounds.
    start = pl.multiple_of(ti * TL, 8)
    pltpu.sync_copy(x_hbm.at[b, pl.ds(start, W), :], xwin)

    # Zero the causal-pad rows of the staging buffer once per grid step
    # (scratch persists across steps; this is one tiny aligned store).
    pbuf[0:POFF, :] = jnp.zeros((POFF, CpS), jnp.float32)

    # Window rows whose global time index is negative play the role of the
    # causal zero padding for EVERY layer: force them to zero between layers.
    row_ids = jax.lax.broadcasted_iota(jnp.int32, (W, 1), 0)
    tmask = row_ids >= (HALO - ti * TL)

    h = xwin[...]                                     # (W, Cp_in0) f32

    idx = 0
    for layer in layers:
        d = layer["dilation"]
        cpo = layer["cp_out"]
        w1 = wrefs[idx]
        w2 = wrefs[idx + 1]
        idx += 2
        if layer["has_downsample"]:
            wd = wrefs[idx]
            idx += 1
        b1 = bias_ref[layer["b1_row"]:layer["b1_row"] + 1, 0:cpo]
        b2 = bias_ref[layer["b2_row"]:layer["b2_row"] + 1, 0:cpo]

        def taps_of(v, d=d):
            # Stage v behind POFF zero rows, gather the K causal taps
            # (tap j = v[t - j*d], zero above the window) and lay them out
            # contiguously on the lane axis -> (W, K*cp) im2col matrix.
            cp = v.shape[1]
            pbuf[POFF:POFF + W, 0:cp] = v
            cols = [pbuf[POFF - j * d: POFF - j * d + W, 0:cp] for j in range(K)]
            return jnp.concatenate(cols, axis=1).astype(jnp.bfloat16)

        # ---- conv1 (causal dilated) as one im2col matmul + post-added bias ----
        a1 = jnp.dot(taps_of(h), w1[...], preferred_element_type=jnp.float32) + b1
        h1 = jnp.where(tmask, jnp.maximum(a1, 0.0), 0.0)   # ReLU, dropout = id

        # ---- conv2 ----
        a2 = jnp.dot(taps_of(h1), w2[...], preferred_element_type=jnp.float32) + b2
        h2 = jnp.maximum(a2, 0.0)                           # ReLU, dropout = id

        # ---- residual branch (kept in f32 when it is a plain passthrough) ----
        if layer["has_downsample"]:
            bd = bias_ref[layer["bd_row"]:layer["bd_row"] + 1, 0:cpo]
            res = jnp.dot(h.astype(jnp.bfloat16), wd[...],
                          preferred_element_type=jnp.float32) + bd
        else:
            res = h
        h = jnp.where(tmask, jnp.maximum(h2 + res, 0.0), 0.0)

    # Only the TL rows past the halo are valid for this tile.
    o_ref[0] = h[HALO:HALO + TL, :].astype(o_ref.dtype)


def temporal_conv_net(x_ncw, params, *, l_tile=256, out_dtype=jnp.float32):
    """x_ncw: (B, C, L) like PyTorch NCW.  Returns (B, C_last, L) float32.

    l_tile: time rows processed per grid step (production: 256-512).
    out_dtype: kernel HBM writeback dtype (use jnp.bfloat16 on v5e to halve
               output bandwidth if downstream consumers accept it).
    """
    B, C_in, L = x_ncw.shape
    K = params[0]["w1"].shape[0]

    # Per-layer lane-dense channel widths.
    cps = [(_round_up(p["w1"].shape[1], 128), _round_up(p["w1"].shape[2], 128))
           for p in params]
    Cp_in0 = cps[0][0]
    Cp_out_last = cps[-1][1]
    CpS = max(max(a, b) for a, b in cps)      # staging-buffer lane width
    CpB = max(b for _, b in cps)              # packed-bias lane width

    dils = [p["dilation"] for p in params]
    POFF = _round_up((K - 1) * max(dils), 8)              # in-window causal pad
    HALO = _round_up(sum(2 * (K - 1) * d for d in dils), 8)  # cumulative RF halo

    TL = min(_round_up(max(l_tile, 8), 8), _round_up(L, 8))
    nT = pl.cdiv(L, TL)
    L_pad = nT * TL
    W = HALO + TL                                          # window rows per step

    # NCW -> NLC once; front-pad time with the halo (causal zeros), back-pad
    # time to a whole number of tiles, zero-pad channels to the lane width.
    xn = jnp.transpose(x_ncw, (0, 2, 1)).astype(jnp.float32)
    xn = jnp.pad(xn, ((0, 0), (HALO, L_pad - L), (0, Cp_in0 - C_in)))

    weight_args, weight_specs = [], []
    bias_rows = []          # list of (vector, real_width)
    layers_meta = []
    for (cpi, cpo), p in zip(cps, params):
        cin, cout = p["w1"].shape[1], p["w1"].shape[2]
        # Weights stored in tap order: w[j] multiplies h[t - j*dilation]
        # (== PyTorch conv weight[:, :, K-1-j].T), padded per-layer and
        # flattened to the im2col shape (K*Cp_in, Cp_out), cast to bf16.
        w1 = jnp.zeros((K, cpi, cpo), jnp.float32).at[:, :cin, :cout].set(p["w1"])
        w2 = jnp.zeros((K, cpo, cpo), jnp.float32).at[:, :cout, :cout].set(p["w2"])
        weight_args += [w1.reshape(K * cpi, cpo).astype(jnp.bfloat16),
                        w2.reshape(K * cpo, cpo).astype(jnp.bfloat16)]
        weight_specs += [
            pl.BlockSpec((K * cpi, cpo), lambda b, t: (0, 0),
                         pipeline_mode=pl.Buffered(1)),
            pl.BlockSpec((K * cpo, cpo), lambda b, t: (0, 0),
                         pipeline_mode=pl.Buffered(1)),
        ]
        b1_row = len(bias_rows); bias_rows.append((p["b1"], cout))
        b2_row = len(bias_rows); bias_rows.append((p["b2"], cout))
        has_ds = p["wd"] is not None
        bd_row = -1
        if has_ds:
            wd = jnp.zeros((cpi, cpo), jnp.float32).at[:cin, :cout].set(p["wd"])
            weight_args.append(wd.astype(jnp.bfloat16))
            weight_specs.append(pl.BlockSpec((cpi, cpo), lambda b, t: (0, 0),
                                             pipeline_mode=pl.Buffered(1)))
            bd_row = len(bias_rows); bias_rows.append((p["bd"], cout))
        layers_meta.append(dict(dilation=p["dilation"], has_downsample=has_ds,
                                cp_in=cpi, cp_out=cpo,
                                b1_row=b1_row, b2_row=b2_row, bd_row=bd_row))

    # Coalesce all biases into one lane-dense array (single DMA descriptor).
    n_bias = len(bias_rows)
    bias_all = jnp.zeros((n_bias, CpB), jnp.float32)
    for r, (bv, cout) in enumerate(bias_rows):
        bias_all = bias_all.at[r, :cout].set(bv)

    # VMEM budget: ~50 MiB cap on v7x (64 MiB physical), ~100 MiB on v5e/v6e.
    try:
        cap = pltpu.get_tpu_info().vmem_capacity_bytes
        vmem_limit = int(min(int(0.78 * cap), 100 * 1024 * 1024))
    except Exception:
        vmem_limit = 48 * 1024 * 1024

    kernel = functools.partial(_tcn_fused_kernel, layers=tuple(layers_meta),
                               K=K, TL=TL, W=W, HALO=HALO, POFF=POFF, CpS=CpS)

    in_specs = [pl.BlockSpec(memory_space=pl.ANY),            # x stays in HBM
                pl.BlockSpec((n_bias, CpB), lambda b, t: (0, 0),
                             pipeline_mode=pl.Buffered(1))] + weight_specs

    out = pl.pallas_call(
        kernel,
        out_shape=jax.ShapeDtypeStruct((B, L_pad, Cp_out_last), out_dtype),
        grid_spec=pltpu.PrefetchScalarGridSpec(
            num_scalar_prefetch=0,
            grid=(B, nT),
            in_specs=in_specs,
            out_specs=pl.BlockSpec((1, TL, Cp_out_last), lambda b, t: (b, t, 0)),
            scratch_shapes=[
                pltpu.VMEM((POFF + W, CpS), jnp.float32),     # tap staging
                pltpu.VMEM((W, Cp_in0), jnp.float32),         # input window
            ],
        ),
        compiler_params=pltpu.CompilerParams(
            dimension_semantics=("parallel", "parallel"),
            vmem_limit_bytes=vmem_limit,
        ),
    )(xn, bias_all, *weight_args)

    C_out = params[-1]["w1"].shape[2]
    return jnp.transpose(out[:, :L, :C_out].astype(jnp.float32), (0, 2, 1))


def init_tcn_params(key, num_inputs, num_channels, kernel_size):
    """Deterministic synthetic parameters mirroring TemporalConvNet.__init__.

    Weights are stored as (K, in, out) in *tap order* (tap j = shift j*dilation),
    i.e. PyTorch's conv weight[:, :, K-1-j].T.  weight_norm is identity at init.
    """
    params = []
    for i, out_ch in enumerate(num_channels):
        in_ch = num_inputs if i == 0 else num_channels[i - 1]
        key, k1, k2, k3, k4, k5, k6 = jax.random.split(key, 7)
        w1 = 0.01 * jax.random.normal(k1, (kernel_size, in_ch, out_ch), jnp.float32)
        b1 = 0.01 * jax.random.normal(k2, (out_ch,), jnp.float32)
        w2 = 0.01 * jax.random.normal(k3, (kernel_size, out_ch, out_ch), jnp.float32)
        b2 = 0.01 * jax.random.normal(k4, (out_ch,), jnp.float32)
        if in_ch != out_ch:
            wd = 0.01 * jax.random.normal(k5, (in_ch, out_ch), jnp.float32)
            bd = 0.01 * jax.random.normal(k6, (out_ch,), jnp.float32)
        else:
            wd, bd = None, None
        params.append(dict(w1=w1, b1=b1, w2=w2, b2=b2, wd=wd, bd=bd,
                           dilation=2 ** i))
    return params


def tcn_reference(x_ncw, params):
    """Pure-JAX f32 reference of the TCN forward (NCW in / NCW out)."""
    h = x_ncw.astype(jnp.float32)
    for p in params:
        w1 = p["w1"]
        K = w1.shape[0]
        d = p["dilation"]
        pad = (K - 1) * d

        def causal_conv(h_in, w, b):
            Bn, _, Ln = h_in.shape
            hp = jnp.pad(h_in, ((0, 0), (0, 0), (pad, 0)))
            out = jnp.zeros((Bn, w.shape[2], Ln), jnp.float32) + b[None, :, None]
            for j in range(K):
                seg = jax.lax.dynamic_slice_in_dim(hp, pad - j * d, Ln, axis=2)
                out = out + jnp.einsum("bcl,co->bol", seg, w[j])
            return out

        a1 = jax.nn.relu(causal_conv(h, p["w1"], p["b1"]))
        a2 = jax.nn.relu(causal_conv(a1, p["w2"], p["b2"]))
        if p["wd"] is None:
            res = h
        else:
            res = jnp.einsum("bcl,co->bol", h, p["wd"]) + p["bd"][None, :, None]
        h = jax.nn.relu(a2 + res)
    return h


if __name__ == "__main__":
    key = jax.random.PRNGKey(0)
    kx, kp = jax.random.split(key)

    B, C_in, L = 2, 4, 16
    num_channels = [8, 16]
    ksize = 4  # args_kernel_size

    x = jax.random.normal(kx, (B, C_in, L), jnp.float32)
    params = init_tcn_params(kp, C_in, num_channels, ksize)
    ref = jax.block_until_ready(tcn_reference(x, params))

    # 1) Single L tile per grid step (whole demo sequence).
    out1 = jax.block_until_ready(temporal_conv_net(x, params, l_tile=256))
    assert out1.shape == (B, num_channels[-1], L), out1.shape
    assert bool(jnp.all(jnp.isfinite(out1)))
    err1 = float(jnp.max(jnp.abs(out1 - ref)))
    assert bool(jnp.allclose(out1, ref, rtol=2e-2, atol=2e-4)), err1

    # 2) L tiled into two chunks -> exercises the receptive-field halo +
    #    causal-mask path and the 2-D (batch, L-tile) parallel grid.
    out2 = jax.block_until_ready(temporal_conv_net(x, params, l_tile=8))
    err2 = float(jnp.max(jnp.abs(out2 - ref)))
    assert bool(jnp.allclose(out2, ref, rtol=2e-2, atol=2e-4)), err2

    print("KERNEL_OK")
</pallas_src>

<mosaic_0001>
module attributes {stable_mosaic.version = 11 : i64} {
  func.func @_tcn_fused_kernel(%arg0: i32, %arg1: i32, %arg2: memref<2x40x128xf32, #tpu.memory_space<any>>, %arg3: memref<6x128xf32, #tpu.memory_space<vmem>>, %arg4: memref<512x128xbf16, #tpu.memory_space<vmem>>, %arg5: memref<512x128xbf16, #tpu.memory_space<vmem>>, %arg6: memref<128x128xbf16, #tpu.memory_space<vmem>>, %arg7: memref<512x128xbf16, #tpu.memory_space<vmem>>, %arg8: memref<512x128xbf16, #tpu.memory_space<vmem>>, %arg9: memref<128x128xbf16, #tpu.memory_space<vmem>>, %arg10: memref<1x16x128xf32, #tpu.memory_space<vmem>>, %arg11: memref<48x128xf32, #tpu.memory_space<vmem>>, %arg12: memref<40x128xf32, #tpu.memory_space<vmem>>) attributes {dimension_semantics = [#tpu.dimension_semantics<parallel>, #tpu.dimension_semantics<parallel>], iteration_bounds = array<i64: 2, 1>, scalar_prefetch = 0 : i64, scratch_operands = 2 : i64, tpu.core_type = #tpu.core_type<tc>, window_params = [{}, {pipeline_mode = #tpu.pipeline_mode<synchronous>, transform_indices = @transform_1, window_bounds = array<i64: 6, 128>}, {pipeline_mode = #tpu.pipeline_mode<synchronous>, transform_indices = @transform_2, window_bounds = array<i64: 512, 128>}, {pipeline_mode = #tpu.pipeline_mode<synchronous>, transform_indices = @transform_3, window_bounds = array<i64: 512, 128>}, {pipeline_mode = #tpu.pipeline_mode<synchronous>, transform_indices = @transform_4, window_bounds = array<i64: 128, 128>}, {pipeline_mode = #tpu.pipeline_mode<synchronous>, transform_indices = @transform_5, window_bounds = array<i64: 512, 128>}, {pipeline_mode = #tpu.pipeline_mode<synchronous>, transform_indices = @transform_6, window_bounds = array<i64: 512, 128>}, {pipeline_mode = #tpu.pipeline_mode<synchronous>, transform_indices = @transform_7, window_bounds = array<i64: 128, 128>}, {transform_indices = @transform_8, window_bounds = array<i64: 1, 16, 128>}]} {
    %c16_i32 = arith.constant 16 : i32
    %0 = arith.muli %arg1, %c16_i32 : i32
    %1 = tpu.assume_multiple %0, 8 : i32
    "tpu.region"() ({
      %104 = tpu.sem_alloc : memref<!tpu.dma_semaphore, #tpu.memory_space<semaphore_mem>>
      %c0_i32 = arith.constant 0 : i32
      %105 = tpu.memref_slice %arg2[%arg0, %1, %c0_i32] : memref<2x40x128xf32, #tpu.memory_space<any>> -> memref<1x40x128xf32, #tpu.memory_space<any>>
      %106 = tpu.memref_squeeze %105 : memref<1x40x128xf32, #tpu.memory_space<any>> -> memref<40x128xf32, #tpu.memory_space<any>>
      tpu.enqueue_dma source(%106 : memref<40x128xf32, #tpu.memory_space<any>>) target(%arg12 : memref<40x128xf32, #tpu.memory_space<vmem>>) target_semaphore(%104 : memref<!tpu.dma_semaphore, #tpu.memory_space<semaphore_mem>>)
      %c0_i32_79 = arith.constant 0 : i32
      %107 = tpu.memref_slice %arg2[%arg0, %1, %c0_i32_79] : memref<2x40x128xf32, #tpu.memory_space<any>> -> memref<1x40x128xf32, #tpu.memory_space<any>>
      %108 = tpu.memref_squeeze %107 : memref<1x40x128xf32, #tpu.memory_space<any>> -> memref<40x128xf32, #tpu.memory_space<any>>
      tpu.wait_dma2 semaphore(%104 : memref<!tpu.dma_semaphore, #tpu.memory_space<semaphore_mem>>) src(%108 : memref<40x128xf32, #tpu.memory_space<any>>) dst(%arg12 : memref<40x128xf32, #tpu.memory_space<vmem>>)
      tpu.yield
    }) : () -> ()
    %cst = arith.constant 0.000000e+00 : f32
    %2 = vector.broadcast %cst : f32 to vector<8x128xf32>
    %c0 = arith.constant 0 : index
    %c0_0 = arith.constant 0 : index
    %3 = vector.load %arg11[%c0, %c0_0] : memref<48x128xf32, #tpu.memory_space<vmem>>, vector<8x128xf32>
    tpu.vector_store %arg11[%c0, %c0_0], %2 {strides = array<i32>} : memref<48x128xf32, #tpu.memory_space<vmem>>, vector<8x128xf32>,
    %4 = tpu.iota {dimensions = array<i32: 0>} : vector<40x1xi32>
    %c16_i32_1 = arith.constant 16 : i32
    %5 = arith.muli %arg1, %c16_i32_1 : i32
    %c24_i32 = arith.constant 24 : i32
    %6 = arith.subi %c24_i32, %5 : i32
    %7 = vector.broadcast %6 : i32 to vector<40x1xi32>
    %8 = arith.cmpi sge, %4, %7 : vector<40x1xi32>
    %c0_2 = arith.constant 0 : index
    %c0_3 = arith.constant 0 : index
    %9 = vector.load %arg12[%c0_2, %c0_3] : memref<40x128xf32, #tpu.memory_space<vmem>>, vector<40x128xf32>
    %c0_4 = arith.constant 0 : index
    %c0_5 = arith.constant 0 : index
    %10 = vector.load %arg3[%c0_4, %c0_5] : memref<6x128xf32, #tpu.memory_space<vmem>>, vector<1x128xf32>
    %c1 = arith.constant 1 : index
    %c0_6 = arith.constant 0 : index
    %11 = vector.load %arg3[%c1, %c0_6] : memref<6x128xf32, #tpu.memory_space<vmem>>, vector<1x128xf32>
    %c8 = arith.constant 8 : index
    %c0_7 = arith.constant 0 : index
    %12 = vector.load %arg11[%c8, %c0_7] : memref<48x128xf32, #tpu.memory_space<vmem>>, vector<40x128xf32>
    tpu.vector_store %arg11[%c8, %c0_7], %9 {strides = array<i32>} : memref<48x128xf32, #tpu.memory_space<vmem>>, vector<40x128xf32>,
    %c8_8 = arith.constant 8 : index
    %c0_9 = arith.constant 0 : index
    %13 = vector.load %arg11[%c8_8, %c0_9] : memref<48x128xf32, #tpu.memory_space<vmem>>, vector<40x128xf32>
    %c7 = arith.constant 7 : index
    %c0_10 = arith.constant 0 : index
    %14 = vector.load %arg11[%c7, %c0_10] : memref<48x128xf32, #tpu.memory_space<vmem>>, vector<40x128xf32>
    %c6 = arith.constant 6 : index
    %c0_11 = arith.constant 0 : index
    %15 = vector.load %arg11[%c6, %c0_11] : memref<48x128xf32, #tpu.memory_space<vmem>>, vector<40x128xf32>
    %c5 = arith.constant 5 : index
    %c0_12 = arith.constant 0 : index
    %16 = vector.load %arg11[%c5, %c0_12] : memref<48x128xf32, #tpu.memory_space<vmem>>, vector<40x128xf32>
    %17 = tpu.concatenate %13, %14, %15, %16 in 1 : vector<40x128xf32>, vector<40x128xf32>, vector<40x128xf32>, vector<40x128xf32> -> vector<40x512xf32>
    %18 = arith.truncf %17 : vector<40x512xf32> to vector<40x512xbf16>
    %c0_13 = arith.constant 0 : index
    %c0_14 = arith.constant 0 : index
    %19 = vector.load %arg4[%c0_13, %c0_14] : memref<512x128xbf16, #tpu.memory_space<vmem>>, vector<512x128xbf16>
    %cst_15 = arith.constant dense<0.000000e+00> : vector<40x128xf32>
    %20 = tpu.matmul %18, %19, %cst_15 {dimension_numbers = #tpu.dot_dimension_numbers<[1], [0], [0], [1], [0, 0, 1, 1], [], []>} : vector<40x512xbf16>, vector<512x128xbf16>, vector<40x128xf32> -> vector<40x128xf32>
    %21 = vector.broadcast %10 : vector<1x128xf32> to vector<40x128xf32>
    %22 = arith.addf %20, %21 : vector<40x128xf32>
    %cst_16 = arith.constant 0.000000e+00 : f32
    %23 = vector.broadcast %cst_16 : f32 to vector<40x128xf32>
    %24 = arith.maximumf %22, %23 : vector<40x128xf32>
    %cst_17 = arith.constant 0.000000e+00 : f32
    %25 = vector.shape_cast %8 : vector<40x1xi1> to vector<40x1xi1>
    %26 = vector.broadcast %25 : vector<40x1xi1> to vector<40x128xi1>
    %27 = vector.broadcast %cst_17 : f32 to vector<40x128xf32>
    %28 = arith.select %26, %24, %27 : vector<40x128xi1>, vector<40x128xf32>
    %c8_18 = arith.constant 8 : index
    %c0_19 = arith.constant 0 : index
    %29 = vector.load %arg11[%c8_18, %c0_19] : memref<48x128xf32, #tpu.memory_space<vmem>>, vector<40x128xf32>
    tpu.vector_store %arg11[%c8_18, %c0_19], %28 {strides = array<i32>} : memref<48x128xf32, #tpu.memory_space<vmem>>, vector<40x128xf32>,
    %c8_20 = arith.constant 8 : index
    %c0_21 = arith.constant 0 : index
    %30 = vector.load %arg11[%c8_20, %c0_21] : memref<48x128xf32, #tpu.memory_space<vmem>>, vector<40x128xf32>
    %c7_22 = arith.constant 7 : index
    %c0_23 = arith.constant 0 : index
    %31 = vector.load %arg11[%c7_22, %c0_23] : memref<48x128xf32, #tpu.memory_space<vmem>>, vector<40x128xf32>
    %c6_24 = arith.constant 6 : index
    %c0_25 = arith.constant 0 : index
    %32 = vector.load %arg11[%c6_24, %c0_25] : memref<48x128xf32, #tpu.memory_space<vmem>>, vector<40x128xf32>
    %c5_26 = arith.constant 5 : index
    %c0_27 = arith.constant 0 : index
    %33 = vector.load %arg11[%c5_26, %c0_27] : memref<48x128xf32, #tpu.memory_space<vmem>>, vector<40x128xf32>
    %34 = tpu.concatenate %30, %31, %32, %33 in 1 : vector<40x128xf32>, vector<40x128xf32>, vector<40x128xf32>, vector<40x128xf32> -> vector<40x512xf32>
    %35 = arith.truncf %34 : vector<40x512xf32> to vector<40x512xbf16>
    %c0_28 = arith.constant 0 : index
    %c0_29 = arith.constant 0 : index
    %36 = vector.load %arg5[%c0_28, %c0_29] : memref<512x128xbf16, #tpu.memory_space<vmem>>, vector<512x128xbf16>
    %cst_30 = arith.constant dense<0.000000e+00> : vector<40x128xf32>
    %37 = tpu.matmul %35, %36, %cst_30 {dimension_numbers = #tpu.dot_dimension_numbers<[1], [0], [0], [1], [0, 0, 1, 1], [], []>} : vector<40x512xbf16>, vector<512x128xbf16>, vector<40x128xf32> -> vector<40x128xf32>
    %38 = vector.broadcast %11 : vector<1x128xf32> to vector<40x128xf32>
    %39 = arith.addf %37, %38 : vector<40x128xf32>
    %cst_31 = arith.constant 0.000000e+00 : f32
    %40 = vector.broadcast %cst_31 : f32 to vector<40x128xf32>
    %41 = arith.maximumf %39, %40 : vector<40x128xf32>
    %c2 = arith.constant 2 : index
    %c0_32 = arith.constant 0 : index
    %42 = vector.load %arg3[%c2, %c0_32] : memref<6x128xf32, #tpu.memory_space<vmem>>, vector<1x128xf32>
    %43 = arith.truncf %9 : vector<40x128xf32> to vector<40x128xbf16>
    %c0_33 = arith.constant 0 : index
    %c0_34 = arith.constant 0 : index
    %44 = vector.load %arg6[%c0_33, %c0_34] : memref<128x128xbf16, #tpu.memory_space<vmem>>, vector<128x128xbf16>
    %cst_35 = arith.constant dense<0.000000e+00> : vector<40x128xf32>
    %45 = tpu.matmul %43, %44, %cst_35 {dimension_numbers = #tpu.dot_dimension_numbers<[1], [0], [0], [1], [0, 0, 1, 1], [], []>} : vector<40x128xbf16>, vector<128x128xbf16>, vector<40x128xf32> -> vector<40x128xf32>
    %46 = vector.broadcast %42 : vector<1x128xf32> to vector<40x128xf32>
    %47 = arith.addf %45, %46 : vector<40x128xf32>
    %48 = arith.addf %41, %47 : vector<40x128xf32>
    %cst_36 = arith.constant 0.000000e+00 : f32
    %49 = vector.broadcast %cst_36 : f32 to vector<40x128xf32>
    %50 = arith.maximumf %48, %49 : vector<40x128xf32>
    %cst_37 = arith.constant 0.000000e+00 : f32
    %51 = vector.shape_cast %8 : vector<40x1xi1> to vector<40x1xi1>
    %52 = vector.broadcast %51 : vector<40x1xi1> to vector<40x128xi1>
    %53 = vector.broadcast %cst_37 : f32 to vector<40x128xf32>
    %54 = arith.select %52, %50, %53 : vector<40x128xi1>, vector<40x128xf32>
    %c3 = arith.constant 3 : index
    %c0_38 = arith.constant 0 : index
    %55 = vector.load %arg3[%c3, %c0_38] : memref<6x128xf32, #tpu.memory_space<vmem>>, vector<1x128xf32>
    %c4 = arith.constant 4 : index
    %c0_39 = arith.constant 0 : index
    %56 = vector.load %arg3[%c4, %c0_39] : memref<6x128xf32, #tpu.memory_space<vmem>>, vector<1x128xf32>
    %c8_40 = arith.constant 8 : index
    %c0_41 = arith.constant 0 : index
    %57 = vector.load %arg11[%c8_40, %c0_41] : memref<48x128xf32, #tpu.memory_space<vmem>>, vector<40x128xf32>
    tpu.vector_store %arg11[%c8_40, %c0_41], %54 {strides = array<i32>} : memref<48x128xf32, #tpu.memory_space<vmem>>, vector<40x128xf32>,
    %c8_42 = arith.constant 8 : index
    %c0_43 = arith.constant 0 : index
    %58 = vector.load %arg11[%c8_42, %c0_43] : memref<48x128xf32, #tpu.memory_space<vmem>>, vector<40x128xf32>
    %c6_44 = arith.constant 6 : index
    %c0_45 = arith.constant 0 : index
    %59 = vector.load %arg11[%c6_44, %c0_45] : memref<48x128xf32, #tpu.memory_space<vmem>>, vector<40x128xf32>
    %c4_46 = arith.constant 4 : index
    %c0_47 = arith.constant 0 : index
    %60 = vector.load %arg11[%c4_46, %c0_47] : memref<48x128xf32, #tpu.memory_space<vmem>>, vector<40x128xf32>
    %c2_48 = arith.constant 2 : index
    %c0_49 = arith.constant 0 : index
    %61 = vector.load %arg11[%c2_48, %c0_49] : memref<48x128xf32, #tpu.memory_space<vmem>>, vector<40x128xf32>
    %62 = tpu.concatenate %58, %59, %60, %61 in 1 : vector<40x128xf32>, vector<40x128xf32>, vector<40x128xf32>, vector<40x128xf32> -> vector<40x512xf32>
    %63 = arith.truncf %62 : vector<40x512xf32> to vector<40x512xbf16>
    %c0_50 = arith.constant 0 : index
    %c0_51 = arith.constant 0 : index
    %64 = vector.load %arg7[%c0_50, %c0_51] : memref<512x128xbf16, #tpu.memory_space<vmem>>, vector<512x128xbf16>
    %cst_52 = arith.constant dense<0.000000e+00> : vector<40x128xf32>
    %65 = tpu.matmul %63, %64, %cst_52 {dimension_numbers = #tpu.dot_dimension_numbers<[1], [0], [0], [1], [0, 0, 1, 1], [], []>} : vector<40x512xbf16>, vector<512x128xbf16>, vector<40x128xf32> -> vector<40x128xf32>
    %66 = vector.broadcast %55 : vector<1x128xf32> to vector<40x128xf32>
    %67 = arith.addf %65, %66 : vector<40x128xf32>
    %cst_53 = arith.constant 0.000000e+00 : f32
    %68 = vector.broadcast %cst_53 : f32 to vector<40x128xf32>
    %69 = arith.maximumf %67, %68 : vector<40x128xf32>
    %cst_54 = arith.constant 0.000000e+00 : f32
    %70 = vector.shape_cast %8 : vector<40x1xi1> to vector<40x1xi1>
    %71 = vector.broadcast %70 : vector<40x1xi1> to vector<40x128xi1>
    %72 = vector.broadcast %cst_54 : f32 to vector<40x128xf32>
    %73 = arith.select %71, %69, %72 : vector<40x128xi1>, vector<40x128xf32>
    %c8_55 = arith.constant 8 : index
    %c0_56 = arith.constant 0 : index
    %74 = vector.load %arg11[%c8_55, %c0_56] : memref<48x128xf32, #tpu.memory_space<vmem>>, vector<40x128xf32>
    tpu.vector_store %arg11[%c8_55, %c0_56], %73 {strides = array<i32>} : memref<48x128xf32, #tpu.memory_space<vmem>>, vector<40x128xf32>,
    %c8_57 = arith.constant 8 : index
    %c0_58 = arith.constant 0 : index
    %75 = vector.load %arg11[%c8_57, %c0_58] : memref<48x128xf32, #tpu.memory_space<vmem>>, vector<40x128xf32>
    %c6_59 = arith.constant 6 : index
    %c0_60 = arith.constant 0 : index
    %76 = vector.load %arg11[%c6_59, %c0_60] : memref<48x128xf32, #tpu.memory_space<vmem>>, vector<40x128xf32>
    %c4_61 = arith.constant 4 : index
    %c0_62 = arith.constant 0 : index
    %77 = vector.load %arg11[%c4_61, %c0_62] : memref<48x128xf32, #tpu.memory_space<vmem>>, vector<40x128xf32>
    %c2_63 = arith.constant 2 : index
    %c0_64 = arith.constant 0 : index
    %78 = vector.load %arg11[%c2_63, %c0_64] : memref<48x128xf32, #tpu.memory_space<vmem>>, vector<40x128xf32>
    %79 = tpu.concatenate %75, %76, %77, %78 in 1 : vector<40x128xf32>, vector<40x128xf32>, vector<40x128xf32>, vector<40x128xf32> -> vector<40x512xf32>
    %80 = arith.truncf %79 : vector<40x512xf32> to vector<40x512xbf16>
    %c0_65 = arith.constant 0 : index
    %c0_66 = arith.constant 0 : index
    %81 = vector.load %arg8[%c0_65, %c0_66] : memref<512x128xbf16, #tpu.memory_space<vmem>>, vector<512x128xbf16>
    %cst_67 = arith.constant dense<0.000000e+00> : vector<40x128xf32>
    %82 = tpu.matmul %80, %81, %cst_67 {dimension_numbers = #tpu.dot_dimension_numbers<[1], [0], [0], [1], [0, 0, 1, 1], [], []>} : vector<40x512xbf16>, vector<512x128xbf16>, vector<40x128xf32> -> vector<40x128xf32>
    %83 = vector.broadcast %56 : vector<1x128xf32> to vector<40x128xf32>
    %84 = arith.addf %82, %83 : vector<40x128xf32>
    %cst_68 = arith.constant 0.000000e+00 : f32
    %85 = vector.broadcast %cst_68 : f32 to vector<40x128xf32>
    %86 = arith.maximumf %84, %85 : vector<40x128xf32>
    %c5_69 = arith.constant 5 : index
    %c0_70 = arith.constant 0 : index
    %87 = vector.load %arg3[%c5_69, %c0_70] : memref<6x128xf32, #tpu.memory_space<vmem>>, vector<1x128xf32>
    %88 = arith.truncf %54 : vector<40x128xf32> to vector<40x128xbf16>
    %c0_71 = arith.constant 0 : index
    %c0_72 = arith.constant 0 : index
    %89 = vector.load %arg9[%c0_71, %c0_72] : memref<128x128xbf16, #tpu.memory_space<vmem>>, vector<128x128xbf16>
    %cst_73 = arith.constant dense<0.000000e+00> : vector<40x128xf32>
    %90 = tpu.matmul %88, %89, %cst_73 {dimension_numbers = #tpu.dot_dimension_numbers<[1], [0], [0], [1], [0, 0, 1, 1], [], []>} : vector<40x128xbf16>, vector<128x128xbf16>, vector<40x128xf32> -> vector<40x128xf32>
    %91 = vector.broadcast %87 : vector<1x128xf32> to vector<40x128xf32>
    %92 = arith.addf %90, %91 : vector<40x128xf32>
    %93 = arith.addf %86, %92 : vector<40x128xf32>
    %cst_74 = arith.constant 0.000000e+00 : f32
    %94 = vector.broadcast %cst_74 : f32 to vector<40x128xf32>
    %95 = arith.maximumf %93, %94 : vector<40x128xf32>
    %cst_75 = arith.constant 0.000000e+00 : f32
    %96 = vector.shape_cast %8 : vector<40x1xi1> to vector<40x1xi1>
    %97 = vector.broadcast %96 : vector<40x1xi1> to vector<40x128xi1>
    %98 = vector.broadcast %cst_75 : f32 to vector<40x128xf32>
    %99 = arith.select %97, %95, %98 : vector<40x128xi1>, vector<40x128xf32>
    %100 = vector.extract_strided_slice %99 {offsets = [24, 0], sizes = [16, 128], strides = [1, 1]} : vector<40x128xf32> to vector<16x128xf32>
    %c0_76 = arith.constant 0 : index
    %c0_77 = arith.constant 0 : index
    %c0_78 = arith.constant 0 : index
    %101 = vector.load %arg10[%c0_76, %c0_77, %c0_78] : memref<1x16x128xf32, #tpu.memory_space<vmem>>, vector<1x16x128xf32>
    %102 = vector.shape_cast %101 : vector<1x16x128xf32> to vector<16x128xf32>
    %103 = vector.shape_cast %100 : vector<16x128xf32> to vector<1x16x128xf32>
    tpu.vector_store %arg10[%c0_76, %c0_77, %c0_78], %103 {strides = array<i32>} : memref<1x16x128xf32, #tpu.memory_space<vmem>>, vector<1x16x128xf32>,
    return
  }
  func.func @transform_1(%arg0: i32, %arg1: i32) -> (i32, i32) {
    %c0_i32 = arith.constant 0 : i32
    %c0_i32_0 = arith.constant 0 : i32
    %c0_i32_1 = arith.constant 0 : i32
    return %c0_i32, %c0_i32_0 : i32, i32
  }
  func.func @transform_2(%arg0: i32, %arg1: i32) -> (i32, i32) {
    %c0_i32 = arith.constant 0 : i32
    %c0_i32_0 = arith.constant 0 : i32
    %c0_i32_1 = arith.constant 0 : i32
    return %c0_i32, %c0_i32_0 : i32, i32
  }
  func.func @transform_3(%arg0: i32, %arg1: i32) -> (i32, i32) {
    %c0_i32 = arith.constant 0 : i32
    %c0_i32_0 = arith.constant 0 : i32
    %c0_i32_1 = arith.constant 0 : i32
    return %c0_i32, %c0_i32_0 : i32, i32
  }
  func.func @transform_4(%arg0: i32, %arg1: i32) -> (i32, i32) {
    %c0_i32 = arith.constant 0 : i32
    %c0_i32_0 = arith.constant 0 : i32
    %c0_i32_1 = arith.constant 0 : i32
    return %c0_i32, %c0_i32_0 : i32, i32
  }
  func.func @transform_5(%arg0: i32, %arg1: i32) -> (i32, i32) {
    %c0_i32 = arith.constant 0 : i32
    %c0_i32_0 = arith.constant 0 : i32
    %c0_i32_1 = arith.constant 0 : i32
    return %c0_i32, %c0_i32_0 : i32, i32
  }
  func.func @transform_6(%arg0: i32, %arg1: i32) -> (i32, i32) {
    %c0_i32 = arith.constant 0 : i32
    %c0_i32_0 = arith.constant 0 : i32
    %c0_i32_1 = arith.constant 0 : i32
    return %c0_i32, %c0_i32_0 : i32, i32
  }
  func.func @transform_7(%arg0: i32, %arg1: i32) -> (i32, i32) {
    %c0_i32 = arith.constant 0 : i32
    %c0_i32_0 = arith.constant 0 : i32
    %c0_i32_1 = arith.constant 0 : i32
    return %c0_i32, %c0_i32_0 : i32, i32
  }
  func.func @transform_8(%arg0: i32, %arg1: i32) -> (i32, i32, i32) {
    %c0_i32 = arith.constant 0 : i32
    %c0_i32_0 = arith.constant 0 : i32
    return %arg0, %arg1, %c0_i32 : i32, i32, i32
  }
}

</mosaic_0001>

<llo_original>
// kernel: tpu_custom_call.1
$region0: #{tpu_custom_call.1}
  #allocation0 [shape = 'u32[]', space=smem, size = 0x4, offset = 0x4, fixed_abs, tag = 'smem constant byte address 0x4 - core index']
  #allocation1 [shape = 'u32[144,128]{1,0:T(1,128)}', space=vmem, size = 0x12000, scoped, tag = 'internal scratch']
  #allocation2 [shape = 'f32[48,128]{1,0:T(8,128)}', space=vmem, size = 0x6000, scoped, tag = 'scratch operand']
  #allocation3 [shape = 'f32[40,128]{1,0:T(8,128)}', space=vmem, size = 0x5000, scoped, tag = 'scratch operand']
  #allocation18 [shape = 's32[]', space=sflag, size = 0x4, offset = 0, fixed_abs, tag = 'sflag constant byte address 0x0 - dummy sync flag']
  #allocation19 [shape = 's32[]', space=sflag, size = 0x4, offset = 0, fixed_abs, tag = 'sflag constant byte address 0x0 - dummy sync flag']
  #allocation20 [shape = 'u32[]', space=smem, size = 0x4, offset = 0x44, fixed_abs, tag = 'smem constant byte address 0x44 - assertion arg 0']
  #allocation21 [shape = 'u32[]', space=smem, size = 0x4, offset = 0x48, fixed_abs, tag = 'smem constant byte address 0x48 - assertion arg 1']
  %s0 = inlined_call_operand.hbm [shape: f32[2,40,128], index: 0, kind: input, shape index: {}]
  %s1 = inlined_call_operand.hbm [shape: f32[6,128], index: 1, kind: input, shape index: {}]
  %s2 = inlined_call_operand.hbm [shape: bf16[512,128], index: 2, kind: input, shape index: {}]
  %s3 = inlined_call_operand.hbm [shape: bf16[512,128], index: 3, kind: input, shape index: {}]
  %s4 = inlined_call_operand.hbm [shape: bf16[128,128], index: 4, kind: input, shape index: {}]
  %s5 = inlined_call_operand.hbm [shape: bf16[512,128], index: 5, kind: input, shape index: {}]
  %s6 = inlined_call_operand.hbm [shape: bf16[512,128], index: 6, kind: input, shape index: {}]
  %s7 = inlined_call_operand.hbm [shape: bf16[128,128], index: 7, kind: input, shape index: {}]
  %s8 = inlined_call_operand.hbm [shape: f32[2,16,128], index: 8, kind: output, shape index: {}]
  %s9 = sld [smem:[#allocation0]]
  $region94: #{tpu_custom_call.1} parent=0
    _
  %s11 = ssub.s32 1, %s9
  %s12 = scalar_select 0, %s11, %s9
  $region1: #{tpu_custom_call.1} parent=0
    #allocation4 [shape = 'u8[4096]{0}', space=vmem, size = 0x1000, scoped, tag = 'input window, operand 1, single buffered']
    #allocation5 [shape = 's32[2]{0}', space=sflag, size = 0x8, scoped, tag = 'scoped memory for tpu_custom_call.1']
    #allocation6 [shape = 's32[2]{0}', space=sflag, size = 0x8, scoped, tag = 'scoped memory for tpu_custom_call.1']
    #allocation7 [shape = 'u8[131072]{0}', space=vmem, size = 0x20000, scoped, tag = 'input window, operand 2, single buffered']
    #allocation8 [shape = 's32[1]{0}', space=sflag, size = 0x4, scoped, tag = 'scoped memory for tpu_custom_call.1']
    #allocation9 [shape = 'u8[131072]{0}', space=vmem, size = 0x20000, scoped, tag = 'input window, operand 3, single buffered']
    #allocation10 [shape = 'u8[32768]{0}', space=vmem, size = 0x8000, scoped, tag = 'input window, operand 4, single buffered']
    #allocation11 [shape = 's32[1]{0}', space=sflag, size = 0x4, scoped, tag = 'scoped memory for tpu_custom_call.1']
    #allocation12 [shape = 'u8[131072]{0}', space=vmem, size = 0x20000, scoped, tag = 'input window, operand 5, single buffered']
    #allocation13 [shape = 'u8[131072]{0}', space=vmem, size = 0x20000, scoped, tag = 'input window, operand 6, single buffered']
    #allocation14 [shape = 's32[1]{0}', space=sflag, size = 0x4, scoped, tag = 'scoped memory for tpu_custom_call.1']
    #allocation15 [shape = 'u8[32768]{0}', space=vmem, size = 0x8000, scoped, tag = 'input window, operand 7, single buffered']
    #allocation16 [shape = 'u8[16384]{0}', space=vmem, size = 0x4000, scoped, tag = 'output window, operand 0']
    %13 = vsyncpa [#allocation5], 0
    %14 = vsyncpa [#allocation8], 0
    %15 = vsyncpa [#allocation11], 0
    %16 = vsyncpa [#allocation14], 0
    %17 = vsyncpa [#allocation6], 0
    %s18 = scalar_lea.sflag [#allocation6], 1
    %19 = vsyncpa %s18, 0
    loop: start=0, step=1, limit=4
    $region2: #{tpu_custom_call.1} parent=1 // loop_pre_header
      _
    $region3: #{tpu_custom_call.1} parent=1 // loop_header
      %s21 = sphi 0, %s25
      %p22 = scmp.ge.s32.totalorder %s21, 4
      %s28 = sphi 0, %s40
      %s29 = sphi 0, %s36
      %s30 = sphi 0, %s28
      %s31 = sphi 0, %s29
      %s32 = sphi 0, %s30
      %s33 = sphi 0, %s31
      %s41 = sphi 0, %s41
      %s43 = sphi 0, %s41
      %s44 = sphi 0, %s43
      %s58 = sphi 0, %s44
      %s62 = sphi 0, %s62
      %s64 = sphi 0, %s62
      %s65 = sphi 0, %s64
      %s79 = sphi 0, %s65
      %s83 = sphi 0, %s83
      %s85 = sphi 0, %s83
      %s86 = sphi 0, %s85
      %s100 = sphi 0, %s86
      %s104 = sphi 0, %s104
      %s106 = sphi 0, %s104
      %s107 = sphi 0, %s106
      %s121 = sphi 0, %s107
      %s125 = sphi 0, %s125
      %s127 = sphi 0, %s125
      %s128 = sphi 0, %s127
      %s142 = sphi 0, %s128
      %s146 = sphi 0, %s146
      %s148 = sphi 0, %s146
      %s149 = sphi 0, %s148
      %s163 = sphi 0, %s149
      %s167 = sphi 0, %s167
      %s169 = sphi 0, %s167
      %s170 = sphi 0, %s169
      %s184 = sphi 0, %s170
      %s192 = sphi 0, %s194
      %s195 = sphi 0, %s192
      %s196 = sphi 0, %s195
      %s212 = sphi 0, %s196
    $region4: #{tpu_custom_call.1} parent=1 // loop_header_branch
      %24 = sbr.rel (%p22) target = $region8
    $region5: #{tpu_custom_call.1} parent=1 // loop_body
      %s26 = ssub.s32 %s21, 1
      %s27 = ssub.s32 %s21, 2
      %s34 = sadd.s32 1, %s29
      %p35 = scmp.ge.s32.totalorder %s34, 1
      %s36 = scalar_select %p35, 0, %s34
      %s37 = sadd.s32 1, %s28
      %s38 = scalar_select %p35, %s37, %s28
      %p39 = scmp.ge.s32.totalorder %s38, 2
      %s40 = scalar_select %p39, 0, %s38
      %s42 = sadd.s32 %s41, 1
      %p45 = scmp.eq.s32.totalorder %s21, 1
      %p46 = scmp.ne.s32.totalorder %s41, %s43
      %p47 = scmp.eq.s32.totalorder %s21, 0
      %p48 = por %p46, %p47
      %p49 = scmp.ne.s32.totalorder %s41, %s43
      %p50 = scmp.eq.s32.totalorder %s26, 1
      %p51 = por %p49, %p50
      %p52 = scmp.ne.s32.totalorder %s43, %s44
      %p53 = scmp.eq.s32.totalorder %s26, 0
      %p54 = por %p52, %p53
      %p55 = scmp.ne.s32.totalorder %s43, %s44
      %p56 = scmp.eq.s32.totalorder %s27, 1
      %p57 = por %p55, %p56
      %p59 = scmp.ne.s32.totalorder %s44, %s58
      %p60 = scmp.eq.s32.totalorder %s27, 0
      %p61 = por %p59, %p60
      %s63 = sadd.s32 %s62, 1
      %p66 = scmp.eq.s32.totalorder %s21, 1
      %p67 = scmp.ne.s32.totalorder %s62, %s64
      %p68 = scmp.eq.s32.totalorder %s21, 0
      %p69 = por %p67, %p68
      %p70 = scmp.ne.s32.totalorder %s62, %s64
      %p71 = scmp.eq.s32.totalorder %s26, 1
      %p72 = por %p70, %p71
      %p73 = scmp.ne.s32.totalorder %s64, %s65
      %p74 = scmp.eq.s32.totalorder %s26, 0
      %p75 = por %p73, %p74
      %p76 = scmp.ne.s32.totalorder %s64, %s65
      %p77 = scmp.eq.s32.totalorder %s27, 1
      %p78 = por %p76, %p77
      %p80 = scmp.ne.s32.totalorder %s65, %s79
      %p81 = scmp.eq.s32.totalorder %s27, 0
      %p82 = por %p80, %p81
      %s84 = sadd.s32 %s83, 1
      %p87 = scmp.eq.s32.totalorder %s21, 1
      %p88 = scmp.ne.s32.totalorder %s83, %s85
      %p89 = scmp.eq.s32.totalorder %s21, 0
      %p90 = por %p88, %p89
      %p91 = scmp.ne.s32.totalorder %s83, %s85
      %p92 = scmp.eq.s32.totalorder %s26, 1
      %p93 = por %p91, %p92
      %p94 = scmp.ne.s32.totalorder %s85, %s86
      %p95 = scmp.eq.s32.totalorder %s26, 0
      %p96 = por %p94, %p95
      %p97 = scmp.ne.s32.totalorder %s85, %s86
      %p98 = scmp.eq.s32.totalorder %s27, 1
      %p99 = por %p97, %p98
      %p101 = scmp.ne.s32.totalorder %s86, %s100
      %p102 = scmp.eq.s32.totalorder %s27, 0
      %p103 = por %p101, %p102
      %s105 = sadd.s32 %s104, 1
      %p108 = scmp.eq.s32.totalorder %s21, 1
      %p109 = scmp.ne.s32.totalorder %s104, %s106
      %p110 = scmp.eq.s32.totalorder %s21, 0
      %p111 = por %p109, %p110
      %p112 = scmp.ne.s32.totalorder %s104, %s106
      %p113 = scmp.eq.s32.totalorder %s26, 1
      %p114 = por %p112, %p113
      %p115 = scmp.ne.s32.totalorder %s106, %s107
      %p116 = scmp.eq.s32.totalorder %s26, 0
      %p117 = por %p115, %p116
      %p118 = scmp.ne.s32.totalorder %s106, %s107
      %p119 = scmp.eq.s32.totalorder %s27, 1
      %p120 = por %p118, %p119
      %p122 = scmp.ne.s32.totalorder %s107, %s121
      %p123 = scmp.eq.s32.totalorder %s27, 0
      %p124 = por %p122, %p123
      %s126 = sadd.s32 %s125, 1
      %p129 = scmp.eq.s32.totalorder %s21, 1
      %p130 = scmp.ne.s32.totalorder %s125, %s127
      %p131 = scmp.eq.s32.totalorder %s21, 0
      %p132 = por %p130, %p131
      %p133 = scmp.ne.s32.totalorder %s125, %s127
      %p134 = scmp.eq.s32.totalorder %s26, 1
      %p135 = por %p133, %p134
      %p136 = scmp.ne.s32.totalorder %s127, %s128
      %p137 = scmp.eq.s32.totalorder %s26, 0
      %p138 = por %p136, %p137
      %p139 = scmp.ne.s32.totalorder %s127, %s128
      %p140 = scmp.eq.s32.totalorder %s27, 1
      %p141 = por %p139, %p140
      %p143 = scmp.ne.s32.totalorder %s128, %s142
      %p144 = scmp.eq.s32.totalorder %s27, 0
      %p145 = por %p143, %p144
      %s147 = sadd.s32 %s146, 1
      %p150 = scmp.eq.s32.totalorder %s21, 1
      %p151 = scmp.ne.s32.totalorder %s146, %s148
      %p152 = scmp.eq.s32.totalorder %s21, 0
      %p153 = por %p151, %p152
      %p154 = scmp.ne.s32.totalorder %s146, %s148
      %p155 = scmp.eq.s32.totalorder %s26, 1
      %p156 = por %p154, %p155
      %p157 = scmp.ne.s32.totalorder %s148, %s149
      %p158 = scmp.eq.s32.totalorder %s26, 0
      %p159 = por %p157, %p158
      %p160 = scmp.ne.s32.totalorder %s148, %s149
      %p161 = scmp.eq.s32.totalorder %s27, 1
      %p162 = por %p160, %p161
      %p164 = scmp.ne.s32.totalorder %s149, %s163
      %p165 = scmp.eq.s32.totalorder %s27, 0
      %p166 = por %p164, %p165
      %s168 = sadd.s32 %s167, 1
      %p171 = scmp.eq.s32.totalorder %s21, 1
      %p172 = scmp.ne.s32.totalorder %s167, %s169
      %p173 = scmp.eq.s32.totalorder %s21, 0
      %p174 = por %p172, %p173
      %p175 = scmp.ne.s32.totalorder %s167, %s169
      %p176 = scmp.eq.s32.totalorder %s26, 1
      %p177 = por %p175, %p176
      %p178 = scmp.ne.s32.totalorder %s169, %s170
      %p179 = scmp.eq.s32.totalorder %s26, 0
      %p180 = por %p178, %p179
      %p181 = scmp.ne.s32.totalorder %s169, %s170
      %p182 = scmp.eq.s32.totalorder %s27, 1
      %p183 = por %p181, %p182
      %p185 = scmp.ne.s32.totalorder %s170, %s184
      %p186 = scmp.eq.s32.totalorder %s27, 0
      %p187 = por %p185, %p186
      %s188 = ssub.s32 %s28, %s40
      %s189 = ssub.s32 %s29, %s36
      %s190 = sor.u32 %s188, %s189
      %p191 = scmp.eq.s32.totalorder %s190, 0
      %s193 = sadd.s32 %s192, 1
      %s194 = scalar_select %p191, %s192, %s193
      %p197 = pneg %p191
      %p198 = scmp.eq.s32.totalorder %s21, 1
      %p199 = por %p197, %p198
      %p200 = scmp.ne.s32.totalorder %s192, %s195
      %p201 = scmp.eq.s32.totalorder %s21, 0
      %p202 = por %p200, %p201
      %p203 = scmp.ne.s32.totalorder %s192, %s195
      %p204 = scmp.eq.s32.totalorder %s26, 1
      %p205 = por %p203, %p204
      %p206 = scmp.ne.s32.totalorder %s195, %s196
      %p207 = scmp.eq.s32.totalorder %s26, 0
      %p208 = por %p206, %p207
      %p209 = scmp.ne.s32.totalorder %s195, %s196
      %p210 = scmp.eq.s32.totalorder %s27, 1
      %p211 = por %p209, %p210
      %p213 = scmp.ne.s32.totalorder %s196, %s212
      %p214 = scmp.eq.s32.totalorder %s27, 0
      %p215 = por %p213, %p214
      %p216 = scmp.le.s32.totalorder 1, %s21
      %p217 = scmp.lt.s32.totalorder %s21, 3
      %p218 = pnand %p216, %p217
      %p219 = pneg %p218
      // Predicated region
      $region9: #{tpu_custom_call.1} parent=5 // pred_check
        _
      $region10: #{tpu_custom_call.1} parent=5 // pred_check_branch
        %221 = sbr.rel (%p218) target = $region12
      $region11: #{tpu_custom_call.1} parent=5 // pred_region
        %s222 = ssub.s32 %s21, 1
        // Predicated region
        $region13: #{tpu_custom_call.1} parent=11 // pred_check
          %p223 = pneg %p54
        $region14: #{tpu_custom_call.1} parent=11 // pred_check_branch
          %225 = sbr.rel (%p223) target = $region16
        $region15: #{tpu_custom_call.1} parent=11 // pred_region
          %s227 = ssub.s32 128, 128
          %228 = vsyncadd [#allocation5], %s227
          %s230 = sshll.u32 [#allocation4], 4
          %s231 = int_to_ptr.vmem [resolvable:$true] %s230
          %233 = dma.hbm_to_vmem [thread:$0]  %s1, 128, %s231, [#allocation5]
        $region16: #{tpu_custom_call.1} parent=11 // pred_fallthru
          _
        // Predicated region
        $region17: #{tpu_custom_call.1} parent=11 // pred_check
          %p234 = pneg %p75
        $region18: #{tpu_custom_call.1} parent=11 // pred_check_branch
          %236 = sbr.rel (%p234) target = $region20
        $region19: #{tpu_custom_call.1} parent=11 // pred_region
          %s238 = ssub.s32 4096, 4096
          %239 = vsyncadd [#allocation8], %s238
          %s240 = sshll.u32 [#allocation7], 4
          %s241 = int_to_ptr.vmem [resolvable:$true] %s240
          %246 = dma.hbm_to_vmem [thread:$0]  %s2, 4096, %s241, [#allocation8], 64, 64, 4
        $region20: #{tpu_custom_call.1} parent=11 // pred_fallthru
          _
        // Predicated region
        $region21: #{tpu_custom_call.1} parent=11 // pred_check
          %p247 = pneg %p96
        $region22: #{tpu_custom_call.1} parent=11 // pred_check_branch
          %249 = sbr.rel (%p247) target = $region24
        $region23: #{tpu_custom_call.1} parent=11 // pred_region
          %s251 = ssub.s32 4096, 4096
          %252 = vsyncadd [#allocation8], %s251
          %s253 = sshll.u32 [#allocation9], 4
          %s254 = int_to_ptr.vmem [resolvable:$true] %s253
          %259 = dma.hbm_to_vmem [thread:$0]  %s3, 4096, %s254, [#allocation8], 64, 64, 4
        $region24: #{tpu_custom_call.1} parent=11 // pred_fallthru
          _
        // Predicated region
        $region25: #{tpu_custom_call.1} parent=11 // pred_check
          %p260 = pneg %p117
        $region26: #{tpu_custom_call.1} parent=11 // pred_check_branch
          %262 = sbr.rel (%p260) target = $region28
        $region27: #{tpu_custom_call.1} parent=11 // pred_region
          %s264 = ssub.s32 1024, 1024
          %265 = vsyncadd [#allocation11], %s264
          %s266 = sshll.u32 [#allocation10], 4
          %s267 = int_to_ptr.vmem [resolvable:$true] %s266
          %272 = dma.hbm_to_vmem [thread:$0]  %s4, 1024, %s267, [#allocation11], 64, 64, 4
        $region28: #{tpu_custom_call.1} parent=11 // pred_fallthru
          _
        // Predicated region
        $region29: #{tpu_custom_call.1} parent=11 // pred_check
          %p273 = pneg %p138
        $region30: #{tpu_custom_call.1} parent=11 // pred_check_branch
          %275 = sbr.rel (%p273) target = $region32
        $region31: #{tpu_custom_call.1} parent=11 // pred_region
          %s277 = ssub.s32 4096, 4096
          %278 = vsyncadd [#allocation11], %s277
          %s279 = sshll.u32 [#allocation12], 4
          %s280 = int_to_ptr.vmem [resolvable:$true] %s279
          %285 = dma.hbm_to_vmem [thread:$0]  %s5, 4096, %s280, [#allocation11], 64, 64, 4
        $region32: #{tpu_custom_call.1} parent=11 // pred_fallthru
          _
        // Predicated region
        $region33: #{tpu_custom_call.1} parent=11 // pred_check
          %p286 = pneg %p159
        $region34: #{tpu_custom_call.1} parent=11 // pred_check_branch
          %288 = sbr.rel (%p286) target = $region36
        $region35: #{tpu_custom_call.1} parent=11 // pred_region
          %s290 = ssub.s32 4096, 4096
          %291 = vsyncadd [#allocation14], %s290
          %s292 = sshll.u32 [#allocation13], 4
          %s293 = int_to_ptr.vmem [resolvable:$true] %s292
          %298 = dma.hbm_to_vmem [thread:$0]  %s6, 4096, %s293, [#allocation14], 64, 64, 4
        $region36: #{tpu_custom_call.1} parent=11 // pred_fallthru
          _
        // Predicated region
        $region37: #{tpu_custom_call.1} parent=11 // pred_check
          %p299 = pneg %p180
        $region38: #{tpu_custom_call.1} parent=11 // pred_check_branch
          %301 = sbr.rel (%p299) target = $region40
        $region39: #{tpu_custom_call.1} parent=11 // pred_region
          %s303 = ssub.s32 1024, 1024
          %304 = vsyncadd [#allocation14], %s303
          %s305 = sshll.u32 [#allocation15], 4
          %s306 = int_to_ptr.vmem [resolvable:$true] %s305
          %311 = dma.hbm_to_vmem [thread:$0]  %s7, 1024, %s306, [#allocation14], 64, 64, 4
        $region40: #{tpu_custom_call.1} parent=11 // pred_fallthru
          _
      $region12: #{tpu_custom_call.1} parent=5 // pred_fallthru
        _
      %p312 = scmp.lt.s32.totalorder %s21, 2
      // Predicated region
      $region41: #{tpu_custom_call.1} parent=5 // pred_check
        %p313 = pneg %p312
      $region42: #{tpu_custom_call.1} parent=5 // pred_check_branch
        %315 = sbr.rel (%p313) target = $region44
      $region43: #{tpu_custom_call.1} parent=5 // pred_region
        _
      $region44: #{tpu_custom_call.1} parent=5 // pred_fallthru
        _
      %p316 = scmp.le.s32.totalorder 1, %s21
      %p317 = scmp.lt.s32.totalorder %s21, 3
      %p318 = pnand %p316, %p317
      %p319 = pneg %p318
      // Predicated region
      $region45: #{tpu_custom_call.1} parent=5 // pred_check
        _
      $region46: #{tpu_custom_call.1} parent=5 // pred_check_branch
        %321 = sbr.rel (%p318) target = $region48
      $region47: #{tpu_custom_call.1} parent=5 // pred_region
        %s322 = ssub.s32 %s21, 1
        // Predicated region
        $region49: #{tpu_custom_call.1} parent=47 // pred_check
          %p323 = pneg %p54
        $region50: #{tpu_custom_call.1} parent=47 // pred_check_branch
          %325 = sbr.rel (%p323) target = $region52
        $region51: #{tpu_custom_call.1} parent=47 // pred_region
          %326 = dma.done [#allocation5], 128
        $region52: #{tpu_custom_call.1} parent=47 // pred_fallthru
          _
        // Predicated region
        $region53: #{tpu_custom_call.1} parent=47 // pred_check
          %p327 = pneg %p75
        $region54: #{tpu_custom_call.1} parent=47 // pred_check_branch
          %329 = sbr.rel (%p327) target = $region56
        $region55: #{tpu_custom_call.1} parent=47 // pred_region
          %330 = dma.done [#allocation8], 4096
        $region56: #{tpu_custom_call.1} parent=47 // pred_fallthru
          _
        // Predicated region
        $region57: #{tpu_custom_call.1} parent=47 // pred_check
          %p331 = pneg %p96
        $region58: #{tpu_custom_call.1} parent=47 // pred_check_branch
          %333 = sbr.rel (%p331) target = $region60
        $region59: #{tpu_custom_call.1} parent=47 // pred_region
          %334 = dma.done [#allocation8], 4096
        $region60: #{tpu_custom_call.1} parent=47 // pred_fallthru
          _
        // Predicated region
        $region61: #{tpu_custom_call.1} parent=47 // pred_check
          %p335 = pneg %p117
        $region62: #{tpu_custom_call.1} parent=47 // pred_check_branch
          %337 = sbr.rel (%p335) target = $region64
        $region63: #{tpu_custom_call.1} parent=47 // pred_region
          %338 = dma.done [#allocation11], 1024
        $region64: #{tpu_custom_call.1} parent=47 // pred_fallthru
          _
        // Predicated region
        $region65: #{tpu_custom_call.1} parent=47 // pred_check
          %p339 = pneg %p138
        $region66: #{tpu_custom_call.1} parent=47 // pred_check_branch
          %341 = sbr.rel (%p339) target = $region68
        $region67: #{tpu_custom_call.1} parent=47 // pred_region
          %342 = dma.done [#allocation11], 4096
        $region68: #{tpu_custom_call.1} parent=47 // pred_fallthru
          _
        // Predicated region
        $region69: #{tpu_custom_call.1} parent=47 // pred_check
          %p343 = pneg %p159
        $region70: #{tpu_custom_call.1} parent=47 // pred_check_branch
          %345 = sbr.rel (%p343) target = $region72
        $region71: #{tpu_custom_call.1} parent=47 // pred_region
          %346 = dma.done [#allocation14], 4096
        $region72: #{tpu_custom_call.1} parent=47 // pred_fallthru
          _
        // Predicated region
        $region73: #{tpu_custom_call.1} parent=47 // pred_check
          %p347 = pneg %p180
        $region74: #{tpu_custom_call.1} parent=47 // pred_check_branch
          %349 = sbr.rel (%p347) target = $region76
        $region75: #{tpu_custom_call.1} parent=47 // pred_region
          %350 = dma.done [#allocation14], 1024
        $region76: #{tpu_custom_call.1} parent=47 // pred_fallthru
          _
        %p351 = pneg %p54
        %p352 = pneg %p51
        %p353 = pneg %p75
        %p354 = pneg %p72
        %p355 = pneg %p96
        %p356 = pneg %p93
        %p357 = pneg %p117
        %p358 = pneg %p114
        %p359 = pneg %p138
        %p360 = pneg %p135
        %p361 = pneg %p159
        %p362 = pneg %p156
        %p363 = pneg %p180
        %p364 = pneg %p177
        %p365 = pneg %p208
        %p366 = pneg %p205
        %s367 = sand.u32 %s195, 1
        %s368 = scalar_lea.sflag [#allocation6], %s367
        %s369 = sand.u32 %s195, 1
        %s370 = smul.addr %s369, 16
        %s371 = scalar_lea.vmem [#allocation16], %s370
        %s372 = smul.u32 2, %s31
        %s374 = smul.u32 %s31, 16
        $region77: #{tpu_custom_call.1} parent=47
          #allocation17 [shape = 's32[1]{0}', space=sflag, size = 0x4, scoped, tag = 'scoped memory for tpu_custom_call.1']
          %s375 = smul.u32 %s30, 40
          %s376 = sadd.s32 %s374, %s375
          %s377 = smul.addr %s376, 16
          %s378 = scalar_lea.hbm %s0, %s377
          // Predicated region
          $region78: #{tpu_custom_call.1} parent=77 // pred_check
            _
          $region79: #{tpu_custom_call.1} parent=77 // pred_check_branch
            %380 = sbr.rel target = $region81
          $region80: #{tpu_custom_call.1} parent=77 // pred_region
            %381 = sst [smem:[#allocation20]] [#allocation19]
            %382 = sst [smem:[#allocation21]] [#allocation18]
          $region81: #{tpu_custom_call.1} parent=77 // pred_fallthru
            _
          %384 = shalt.err (0)
          %s386 = sshll.u32 [#allocation3], 4
          %s387 = int_to_ptr.vmem [resolvable:$true] %s386
          %389 = dma.hbm_to_vmem [thread:$0]  %s378, 640, %s387, [#allocation17]
          %s390 = smul.u32 40, 1
          %s391 = sshll.u32 %s390, 4
          %392 = dma.done [#allocation17], %s391
        %393 = vst [vmem:[#allocation2] sm:$0xff] 0.0
        %v394 = vlaneseq
        %v395 = vshrl.u32 %v394, 7
        %v396 = vadd.s32 %v395, 8
        %v397 = vadd.s32 %v395, 16
        %v398 = vadd.s32 %v395, 24
        %v399 = vadd.s32 %v395, 32
        %s400 = ssub.s32 24, %s374
        %v401 = vstv %s400
        %vm402 = vcmp.ge.s32.totalorder %v395, %v401
        %vm403 = vcmp.ge.s32.totalorder %v396, %v401
        %vm404 = vcmp.ge.s32.totalorder %v397, %v401
        %vm405 = vcmp.ge.s32.totalorder %v398, %v401
        %vm406 = vcmp.ge.s32.totalorder %v399, %v401
        %v407 = vld [vmem:[#allocation3] sm:$0xff]
        %v408 = vld [vmem:[#allocation3 + $0x8] sm:$0xff]
        %v409 = vld [vmem:[#allocation3 + $0x10] sm:$0xff]
        %v410 = vld [vmem:[#allocation3 + $0x18] sm:$0xff]
        %v411 = vld [vmem:[#allocation3 + $0x20] sm:$0xff]
        %v412 = vld [vmem:[#allocation4] sm:$0x1]
        %v413 = vld [vmem:[#allocation4 + $0x1] sm:$0x1]
        %414 = vst [vmem:[#allocation2 + $0x8] sm:$0xff] %v407
        %415 = vst [vmem:[#allocation2 + $0x10] sm:$0xff] %v408
        %416 = vst [vmem:[#allocation2 + $0x18] sm:$0xff] %v409
        %417 = vst [vmem:[#allocation2 + $0x20] sm:$0xff] %v410
        %418 = vst [vmem:[#allocation2 + $0x28] sm:$0xff] %v411
        %v419 = vld [vmem:[#allocation2 + $0x8] sm:$0xff]
        %v420 = vld [vmem:[#allocation2 + $0x10] sm:$0xff]
        %v421 = vld [vmem:[#allocation2 + $0x18] sm:$0xff]
        %v422 = vld [vmem:[#allocation2 + $0x20] sm:$0xff]
        %v423 = vld [vmem:[#allocation2 + $0x28] sm:$0xff]
        %v424 = vld [vmem:[#allocation2 + $0x7] sm:$0xff]
        %v425 = vld [vmem:[#allocation2 + $0xf] sm:$0xff]
        %v426 = vld [vmem:[#allocation2 + $0x17] sm:$0xff]
        %v427 = vld [vmem:[#allocation2 + $0x1f] sm:$0xff]
        %v428 = vld [vmem:[#allocation2 + $0x27] sm:$0xff]
        %v429 = vld [vmem:[#allocation2 + $0x6] sm:$0xff]
        %v430 = vld [vmem:[#allocation2 + $0xe] sm:$0xff]
        %v431 = vld [vmem:[#allocation2 + $0x16] sm:$0xff]
        %v432 = vld [vmem:[#allocation2 + $0x1e] sm:$0xff]
        %v433 = vld [vmem:[#allocation2 + $0x26] sm:$0xff]
        %v434 = vld [vmem:[#allocation2 + $0x5] sm:$0xff]
        %v435 = vld [vmem:[#allocation2 + $0xd] sm:$0xff]
        %v436 = vld [vmem:[#allocation2 + $0x15] sm:$0xff]
        %v437 = vld [vmem:[#allocation2 + $0x1d] sm:$0xff]
        %v438 = vld [vmem:[#allocation2 + $0x25] sm:$0xff]
        %v439 = vpack.c.bf16 %v420, %v419
        %v440 = vpack.c.bf16 %v425, %v424
        %v441 = vpack.c.bf16 %v430, %v429
        %v442 = vpack.c.bf16 %v435, %v434
        %v443 = vpack.c.bf16 %v422, %v421
        %v444 = vpack.c.bf16 %v427, %v426
        %v445 = vpack.c.bf16 %v432, %v431
        %v446 = vpack.c.bf16 %v437, %v436
        %v447 = vpack.c.bf16 %v423, %v423
        %v448 = vpack.c.bf16 %v428, %v428
        %v449 = vpack.c.bf16 %v433, %v433
        %v450 = vpack.c.bf16 %v438, %v438
        %v451 = vld [vmem:[#allocation7] sm:$0xf]
        %v452 = vld [vmem:[#allocation7 + $0x4] sm:$0xf]
        %v453 = vld [vmem:[#allocation7 + $0x8] sm:$0xf]
        %v454 = vld [vmem:[#allocation7 + $0xc] sm:$0xf]
        %v455 = vld [vmem:[#allocation7 + $0x10] sm:$0xf]
        %v456 = vld [vmem:[#allocation7 + $0x14] sm:$0xf]
        %v457 = vld [vmem:[#allocation7 + $0x18] sm:$0xf]
        %v458 = vld [vmem:[#allocation7 + $0x1c] sm:$0xf]
        %v459 = vld [vmem:[#allocation7 + $0x20] sm:$0xf]
        %v460 = vld [vmem:[#allocation7 + $0x24] sm:$0xf]
        %v461 = vld [vmem:[#allocation7 + $0x28] sm:$0xf]
        %v462 = vld [vmem:[#allocation7 + $0x2c] sm:$0xf]
        %v463 = vld [vmem:[#allocation7 + $0x30] sm:$0xf]
        %v464 = vld [vmem:[#allocation7 + $0x34] sm:$0xf]
        %v465 = vld [vmem:[#allocation7 + $0x38] sm:$0xf]
        %v466 = vld [vmem:[#allocation7 + $0x3c] sm:$0xf]
        %v467 = vld [vmem:[#allocation7 + $0x40] sm:$0xf]
        %v468 = vld [vmem:[#allocation7 + $0x44] sm:$0xf]
        %v469 = vld [vmem:[#allocation7 + $0x48] sm:$0xf]
        %v470 = vld [vmem:[#allocation7 + $0x4c] sm:$0xf]
        %v471 = vld [vmem:[#allocation7 + $0x50] sm:$0xf]
        %v472 = vld [vmem:[#allocation7 + $0x54] sm:$0xf]
        %v473 = vld [vmem:[#allocation7 + $0x58] sm:$0xf]
        %v474 = vld [vmem:[#allocation7 + $0x5c] sm:$0xf]
        %v475 = vld [vmem:[#allocation7 + $0x60] sm:$0xf]
        %v476 = vld [vmem:[#allocation7 + $0x64] sm:$0xf]
        %v477 = vld [vmem:[#allocation7 + $0x68] sm:$0xf]
        %v478 = vld [vmem:[#allocation7 + $0x6c] sm:$0xf]
        %v479 = vld [vmem:[#allocation7 + $0x70] sm:$0xf]
        %v480 = vld [vmem:[#allocation7 + $0x74] sm:$0xf]
        %v481 = vld [vmem:[#allocation7 + $0x78] sm:$0xf]
        %v482 = vld [vmem:[#allocation7 + $0x7c] sm:$0xf]
        %v483 = vld [vmem:[#allocation7 + $0x80] sm:$0xf]
        %v484 = vld [vmem:[#allocation7 + $0x84] sm:$0xf]
        %v485 = vld [vmem:[#allocation7 + $0x88] sm:$0xf]
        %v486 = vld [vmem:[#allocation7 + $0x8c] sm:$0xf]
        %v487 = vld [vmem:[#allocation7 + $0x90] sm:$0xf]
        %v488 = vld [vmem:[#allocation7 + $0x94] sm:$0xf]
        %v489 = vld [vmem:[#allocation7 + $0x98] sm:$0xf]
        %v490 = vld [vmem:[#allocation7 + $0x9c] sm:$0xf]
        %v491 = vld [vmem:[#allocation7 + $0xa0] sm:$0xf]
        %v492 = vld [vmem:[#allocation7 + $0xa4] sm:$0xf]
        %v493 = vld [vmem:[#allocation7 + $0xa8] sm:$0xf]
        %v494 = vld [vmem:[#allocation7 + $0xac] sm:$0xf]
        %v495 = vld [vmem:[#allocation7 + $0xb0] sm:$0xf]
        %v496 = vld [vmem:[#allocation7 + $0xb4] sm:$0xf]
        %v497 = vld [vmem:[#allocation7 + $0xb8] sm:$0xf]
        %v498 = vld [vmem:[#allocation7 + $0xbc] sm:$0xf]
        %v499 = vld [vmem:[#allocation7 + $0xc0] sm:$0xf]
        %v500 = vld [vmem:[#allocation7 + $0xc4] sm:$0xf]
        %v501 = vld [vmem:[#allocation7 + $0xc8] sm:$0xf]
        %v502 = vld [vmem:[#allocation7 + $0xcc] sm:$0xf]
        %v503 = vld [vmem:[#allocation7 + $0xd0] sm:$0xf]
        %v504 = vld [vmem:[#allocation7 + $0xd4] sm:$0xf]
        %v505 = vld [vmem:[#allocation7 + $0xd8] sm:$0xf]
        %v506 = vld [vmem:[#allocation7 + $0xdc] sm:$0xf]
        %v507 = vld [vmem:[#allocation7 + $0xe0] sm:$0xf]
        %v508 = vld [vmem:[#allocation7 + $0xe4] sm:$0xf]
        %v509 = vld [vmem:[#allocation7 + $0xe8] sm:$0xf]
        %v510 = vld [vmem:[#allocation7 + $0xec] sm:$0xf]
        %v511 = vld [vmem:[#allocation7 + $0xf0] sm:$0xf]
        %v512 = vld [vmem:[#allocation7 + $0xf4] sm:$0xf]
        %v513 = vld [vmem:[#allocation7 + $0xf8] sm:$0xf]
        %v514 = vld [vmem:[#allocation7 + $0xfc] sm:$0xf]
        %v515 = vlaneseq
        %v516 = vshrl.u32 %v515, 7
        %v517 = vsub.s32 0, %v516
        %v518 = vrot.slane %v412, %v517
        %v583 = vunpack.c.l.b16 %v451
        %v584 = vunpack.c.l.b16 %v452
        %v585 = vunpack.c.l.b16 %v453
        %v586 = vunpack.c.l.b16 %v454
        %v587 = vunpack.c.l.b16 %v455
        %v588 = vunpack.c.l.b16 %v456
        %v589 = vunpack.c.l.b16 %v457
        %v590 = vunpack.c.l.b16 %v458
        %v591 = vunpack.c.l.b16 %v459
        %v592 = vunpack.c.l.b16 %v460
        %v593 = vunpack.c.l.b16 %v461
        %v594 = vunpack.c.l.b16 %v462
        %v595 = vunpack.c.l.b16 %v463
        %v596 = vunpack.c.l.b16 %v464
        %v597 = vunpack.c.l.b16 %v465
        %v598 = vunpack.c.l.b16 %v466
        %v599 = vunpack.c.l.b16 %v467
        %v600 = vunpack.c.l.b16 %v468
        %v601 = vunpack.c.l.b16 %v469
        %v602 = vunpack.c.l.b16 %v470
        %v603 = vunpack.c.l.b16 %v471
        %v604 = vunpack.c.l.b16 %v472
        %v605 = vunpack.c.l.b16 %v473
        %v606 = vunpack.c.l.b16 %v474
        %v607 = vunpack.c.l.b16 %v475
        %v608 = vunpack.c.l.b16 %v476
        %v609 = vunpack.c.l.b16 %v477
        %v610 = vunpack.c.l.b16 %v478
        %v611 = vunpack.c.l.b16 %v479
        %v612 = vunpack.c.l.b16 %v480
        %v613 = vunpack.c.l.b16 %v481
        %v614 = vunpack.c.l.b16 %v482
        %v615 = vunpack.c.l.b16 %v483
        %v616 = vunpack.c.l.b16 %v484
        %v617 = vunpack.c.l.b16 %v485
        %v618 = vunpack.c.l.b16 %v486
        %v619 = vunpack.c.l.b16 %v487
        %v620 = vunpack.c.l.b16 %v488
        %v621 = vunpack.c.l.b16 %v489
        %v622 = vunpack.c.l.b16 %v490
        %v623 = vunpack.c.l.b16 %v491
        %v624 = vunpack.c.l.b16 %v492
        %v625 = vunpack.c.l.b16 %v493
        %v626 = vunpack.c.l.b16 %v494
        %v627 = vunpack.c.l.b16 %v495
        %v628 = vunpack.c.l.b16 %v496
        %v629 = vunpack.c.l.b16 %v497
        %v630 = vunpack.c.l.b16 %v498
        %v631 = vunpack.c.l.b16 %v499
        %v632 = vunpack.c.l.b16 %v500
        %v633 = vunpack.c.l.b16 %v501
        %v634 = vunpack.c.l.b16 %v502
        %v635 = vunpack.c.l.b16 %v503
        %v636 = vunpack.c.l.b16 %v504
        %v637 = vunpack.c.l.b16 %v505
        %v638 = vunpack.c.l.b16 %v506
        %v639 = vunpack.c.l.b16 %v507
        %v640 = vunpack.c.l.b16 %v508
        %v641 = vunpack.c.l.b16 %v509
        %v642 = vunpack.c.l.b16 %v510
        %v643 = vunpack.c.l.b16 %v511
        %v644 = vunpack.c.l.b16 %v512
        %v645 = vunpack.c.l.b16 %v513
        %v646 = vunpack.c.l.b16 %v514
        %v647 = vpack.c.b16 %v584, %v583
        %v648 = vpack.c.b16 %v586, %v585
        %v649 = vpack.c.b16 %v588, %v587
        %v650 = vpack.c.b16 %v590, %v589
        %v651 = vpack.c.b16 %v592, %v591
        %v652 = vpack.c.b16 %v594, %v593
        %v653 = vpack.c.b16 %v596, %v595
        %v654 = vpack.c.b16 %v598, %v597
        %v655 = vpack.c.b16 %v600, %v599
        %v656 = vpack.c.b16 %v602, %v601
        %v657 = vpack.c.b16 %v604, %v603
        %v658 = vpack.c.b16 %v606, %v605
        %v659 = vpack.c.b16 %v608, %v607
        %v660 = vpack.c.b16 %v610, %v609
        %v661 = vpack.c.b16 %v612, %v611
        %v662 = vpack.c.b16 %v614, %v613
        %v663 = vpack.c.b16 %v616, %v615
        %v664 = vpack.c.b16 %v618, %v617
        %v665 = vpack.c.b16 %v620, %v619
        %v666 = vpack.c.b16 %v622, %v621
        %v667 = vpack.c.b16 %v624, %v623
        %v668 = vpack.c.b16 %v626, %v625
        %v669 = vpack.c.b16 %v628, %v627
        %v670 = vpack.c.b16 %v630, %v629
        %v671 = vpack.c.b16 %v632, %v631
        %v672 = vpack.c.b16 %v634, %v633
        %v673 = vpack.c.b16 %v636, %v635
        %v674 = vpack.c.b16 %v638, %v637
        %v675 = vpack.c.b16 %v640, %v639
        %v676 = vpack.c.b16 %v642, %v641
        %v677 = vpack.c.b16 %v644, %v643
        %v678 = vpack.c.b16 %v646, %v645
        %711 = vmatprep.subr.bf16.mxu0 0
        %712 = vmatpush1.bf16.msra.mxu0 %v654
        %713 = vmatprep.subr.bf16.mxu0 0
        %714 = vmatpush1.bf16.msra.mxu0 %v653
        %715 = vmatprep.subr.bf16.mxu0 0
        %716 = vmatpush1.bf16.msra.mxu0 %v652
        %717 = vmatprep.subr.bf16.mxu0 0
        %718 = vmatpush1.bf16.msra.mxu0 %v651
        %719 = vmatprep.subr.bf16.mxu0 0
        %720 = vmatpush1.bf16.msra.mxu0 %v650
        %721 = vmatprep.subr.bf16.mxu0 0
        %722 = vmatpush1.bf16.msra.mxu0 %v649
        %723 = vmatprep.subr.bf16.mxu0 0
        %724 = vmatpush1.bf16.msra.mxu0 %v648
        %725 = vmatprep.subr.bf16.mxu0 0
        %726 = vmatpush1.bf16.msra.mxu0 %v647
        %727 = vmatprep.subr.bf16.mxu0 0
        %728 = vmatpush2.bf16.msra.mxu0 %v662
        %729 = vmatprep.subr.bf16.mxu0 0
        %730 = vmatpush2.bf16.msra.mxu0 %v661
        %731 = vmatprep.subr.bf16.mxu0 0
        %732 = vmatpush2.bf16.msra.mxu0 %v660
        %733 = vmatprep.subr.bf16.mxu0 0
        %734 = vmatpush2.bf16.msra.mxu0 %v659
        %735 = vmatprep.subr.bf16.mxu0 0
        %736 = vmatpush2.bf16.msra.mxu0 %v658
        %737 = vmatprep.subr.bf16.mxu0 0
        %738 = vmatpush2.bf16.msra.mxu0 %v657
        %739 = vmatprep.subr.bf16.mxu0 0
        %740 = vmatpush2.bf16.msra.mxu0 %v656
        %741 = vmatprep.subr.bf16.mxu0 0
        %742 = vmatpush2.bf16.msra.mxu0 %v655
        %743 = vmatprep.mubr.bf16.mxu0 %v440
        %744 = vmatmul.mubr.bf16.gmra.mxu0 %v439
        %v745 = vpop.f32.mrf.mxu0
        %v746 = vadd.f32 %v518, %v745
        %v747 = vpop.f32.mrf.mxu0
        %v748 = vpop.f32.mrf.mxu0
        %v749 = vadd.f32 %v518, %v748
        %v750 = vpop.f32.mrf.mxu0
        %751 = vmatprep.mubr.bf16.mxu0 %v444
        %752 = vmatmul.mubr.bf16.gmra.mxu0 %v443
        %v753 = vpop.f32.mrf.mxu0
        %v754 = vadd.f32 %v518, %v753
        %v755 = vpop.f32.mrf.mxu0
        %v756 = vpop.f32.mrf.mxu0
        %v757 = vadd.f32 %v518, %v756
        %v758 = vpop.f32.mrf.mxu0
        %759 = vmatprep.mubr.bf16.mxu0 %v448
        %760 = vmatmul.mubr.bf16.gmra.mxu0 %v447
        %v761 = vpop.f32.mrf.mxu0
        %v762 = vadd.f32 %v518, %v761
        %v763 = vpop.f32.mrf.mxu0
        %v764 = vpop.f32.mrf.mxu0
        %v765 = vpop.f32.mrf.mxu0
        %766 = vdwg.mxu0
        %767 = vmatprep.subr.bf16.mxu0 0
        %768 = vmatpush1.bf16.msra.mxu0 %v670
        %769 = vmatprep.subr.bf16.mxu0 0
        %770 = vmatpush1.bf16.msra.mxu0 %v669
        %771 = vmatprep.subr.bf16.mxu0 0
        %772 = vmatpush1.bf16.msra.mxu0 %v668
        %773 = vmatprep.subr.bf16.mxu0 0
        %774 = vmatpush1.bf16.msra.mxu0 %v667
        %775 = vmatprep.subr.bf16.mxu0 0
        %776 = vmatpush1.bf16.msra.mxu0 %v666
        %777 = vmatprep.subr.bf16.mxu0 0
        %778 = vmatpush1.bf16.msra.mxu0 %v665
        %779 = vmatprep.subr.bf16.mxu0 0
        %780 = vmatpush1.bf16.msra.mxu0 %v664
        %781 = vmatprep.subr.bf16.mxu0 0
        %782 = vmatpush1.bf16.msra.mxu0 %v663
        %783 = vmatprep.subr.bf16.mxu0 0
        %784 = vmatpush2.bf16.msra.mxu0 %v678
        %785 = vmatprep.subr.bf16.mxu0 0
        %786 = vmatpush2.bf16.msra.mxu0 %v677
        %787 = vmatprep.subr.bf16.mxu0 0
        %788 = vmatpush2.bf16.msra.mxu0 %v676
        %789 = vmatprep.subr.bf16.mxu0 0
        %790 = vmatpush2.bf16.msra.mxu0 %v675
        %791 = vmatprep.subr.bf16.mxu0 0
        %792 = vmatpush2.bf16.msra.mxu0 %v674
        %793 = vmatprep.subr.bf16.mxu0 0
        %794 = vmatpush2.bf16.msra.mxu0 %v673
        %795 = vmatprep.subr.bf16.mxu0 0
        %796 = vmatpush2.bf16.msra.mxu0 %v672
        %797 = vmatprep.subr.bf16.mxu0 0
        %798 = vmatpush2.bf16.msra.mxu0 %v671
        %799 = vmatprep.mubr.bf16.mxu0 %v442
        %800 = vmatmul.mubr.bf16.gmra.mxu0 %v441
        %v801 = vpop.f32.mrf.mxu0
        %v802 = vadd.f32 %v746, %v801
        %v803 = vpop.f32.mrf.mxu0
        %v804 = vpop.f32.mrf.mxu0
        %v805 = vadd.f32 %v749, %v804
        %v806 = vpop.f32.mrf.mxu0
        %807 = vmatprep.mubr.bf16.mxu0 %v446
        %808 = vmatmul.mubr.bf16.gmra.mxu0 %v445
        %v809 = vpop.f32.mrf.mxu0
        %v810 = vadd.f32 %v754, %v809
        %v811 = vpop.f32.mrf.mxu0
        %v812 = vpop.f32.mrf.mxu0
        %v813 = vadd.f32 %v757, %v812
        %v814 = vpop.f32.mrf.mxu0
        %815 = vmatprep.mubr.bf16.mxu0 %v450
        %816 = vmatmul.mubr.bf16.gmra.mxu0 %v449
        %v817 = vpop.f32.mrf.mxu0
        %v818 = vadd.f32 %v762, %v817
        %v819 = vpop.f32.mrf.mxu0
        %v820 = vpop.f32.mrf.mxu0
        %v821 = vpop.f32.mrf.mxu0
        %822 = vdwg.mxu0
        %v823 = vmax.f32 %v802, 0.0
        %v824 = vmax.f32 %v805, 0.0
        %v825 = vmax.f32 %v810, 0.0
        %v826 = vmax.f32 %v813, 0.0
        %v827 = vmax.f32 %v818, 0.0
        %v828 = vsel %vm402, 1, 0
        %v829 = vsel %vm403, 1, 0
        %v830 = vsel %vm404, 1, 0
        %v831 = vsel %vm405, 1, 0
        %v832 = vsel %vm406, 1, 0
        %vm833 = vcmp.eq.s32.totalorder %v828, 1
        %vm834 = vcmp.eq.s32.totalorder %v829, 1
        %vm835 = vcmp.eq.s32.totalorder %v830, 1
        %vm836 = vcmp.eq.s32.totalorder %v831, 1
        %vm837 = vcmp.eq.s32.totalorder %v832, 1
        %v838 = vsel %vm833, %v823, 0.0
        %v839 = vsel %vm834, %v824, 0.0
        %v840 = vsel %vm835, %v825, 0.0
        %v841 = vsel %vm836, %v826, 0.0
        %v842 = vsel %vm837, %v827, 0.0
        %843 = vst [vmem:[#allocation2 + $0x8] sm:$0xff] %v838
        %844 = vst [vmem:[#allocation2 + $0x10] sm:$0xff] %v839
        %845 = vst [vmem:[#allocation2 + $0x18] sm:$0xff] %v840
        %846 = vst [vmem:[#allocation2 + $0x20] sm:$0xff] %v841
        %847 = vst [vmem:[#allocation2 + $0x28] sm:$0xff] %v842
        %v848 = vld [vmem:[#allocation2 + $0x8] sm:$0xff]
        %v849 = vld [vmem:[#allocation2 + $0x10] sm:$0xff]
        %v850 = vld [vmem:[#allocation2 + $0x18] sm:$0xff]
        %v851 = vld [vmem:[#allocation2 + $0x20] sm:$0xff]
        %v852 = vld [vmem:[#allocation2 + $0x28] sm:$0xff]
        %v853 = vld [vmem:[#allocation2 + $0x7] sm:$0xff]
        %v854 = vld [vmem:[#allocation2 + $0xf] sm:$0xff]
        %v855 = vld [vmem:[#allocation2 + $0x17] sm:$0xff]
        %v856 = vld [vmem:[#allocation2 + $0x1f] sm:$0xff]
        %v857 = vld [vmem:[#allocation2 + $0x27] sm:$0xff]
        %v858 = vld [vmem:[#allocation2 + $0x6] sm:$0xff]
        %v859 = vld [vmem:[#allocation2 + $0xe] sm:$0xff]
        %v860 = vld [vmem:[#allocation2 + $0x16] sm:$0xff]
        %v861 = vld [vmem:[#allocation2 + $0x1e] sm:$0xff]
        %v862 = vld [vmem:[#allocation2 + $0x26] sm:$0xff]
        %v863 = vld [vmem:[#allocation2 + $0x5] sm:$0xff]
        %v864 = vld [vmem:[#allocation2 + $0xd] sm:$0xff]
        %v865 = vld [vmem:[#allocation2 + $0x15] sm:$0xff]
        %v866 = vld [vmem:[#allocation2 + $0x1d] sm:$0xff]
        %v867 = vld [vmem:[#allocation2 + $0x25] sm:$0xff]
        %v868 = vpack.c.bf16 %v849, %v848
        %v869 = vpack.c.bf16 %v854, %v853
        %v870 = vpack.c.bf16 %v859, %v858
        %v871 = vpack.c.bf16 %v864, %v863
        %v872 = vpack.c.bf16 %v851, %v850
        %v873 = vpack.c.bf16 %v856, %v855
        %v874 = vpack.c.bf16 %v861, %v860
        %v875 = vpack.c.bf16 %v866, %v865
        %v876 = vpack.c.bf16 %v852, %v852
        %v877 = vpack.c.bf16 %v857, %v857
        %v878 = vpack.c.bf16 %v862, %v862
        %v879 = vpack.c.bf16 %v867, %v867
        %v880 = vld [vmem:[#allocation9] sm:$0xf]
        %v881 = vld [vmem:[#allocation9 + $0x4] sm:$0xf]
        %v882 = vld [vmem:[#allocation9 + $0x8] sm:$0xf]
        %v883 = vld [vmem:[#allocation9 + $0xc] sm:$0xf]
        %v884 = vld [vmem:[#allocation9 + $0x10] sm:$0xf]
        %v885 = vld [vmem:[#allocation9 + $0x14] sm:$0xf]
        %v886 = vld [vmem:[#allocation9 + $0x18] sm:$0xf]
        %v887 = vld [vmem:[#allocation9 + $0x1c] sm:$0xf]
        %v888 = vld [vmem:[#allocation9 + $0x20] sm:$0xf]
        %v889 = vld [vmem:[#allocation9 + $0x24] sm:$0xf]
        %v890 = vld [vmem:[#allocation9 + $0x28] sm:$0xf]
        %v891 = vld [vmem:[#allocation9 + $0x2c] sm:$0xf]
        %v892 = vld [vmem:[#allocation9 + $0x30] sm:$0xf]
        %v893 = vld [vmem:[#allocation9 + $0x34] sm:$0xf]
        %v894 = vld [vmem:[#allocation9 + $0x38] sm:$0xf]
        %v895 = vld [vmem:[#allocation9 + $0x3c] sm:$0xf]
        %v896 = vld [vmem:[#allocation9 + $0x40] sm:$0xf]
        %v897 = vld [vmem:[#allocation9 + $0x44] sm:$0xf]
        %v898 = vld [vmem:[#allocation9 + $0x48] sm:$0xf]
        %v899 = vld [vmem:[#allocation9 + $0x4c] sm:$0xf]
        %v900 = vld [vmem:[#allocation9 + $0x50] sm:$0xf]
        %v901 = vld [vmem:[#allocation9 + $0x54] sm:$0xf]
        %v902 = vld [vmem:[#allocation9 + $0x58] sm:$0xf]
        %v903 = vld [vmem:[#allocation9 + $0x5c] sm:$0xf]
        %v904 = vld [vmem:[#allocation9 + $0x60] sm:$0xf]
        %v905 = vld [vmem:[#allocation9 + $0x64] sm:$0xf]
        %v906 = vld [vmem:[#allocation9 + $0x68] sm:$0xf]
        %v907 = vld [vmem:[#allocation9 + $0x6c] sm:$0xf]
        %v908 = vld [vmem:[#allocation9 + $0x70] sm:$0xf]
        %v909 = vld [vmem:[#allocation9 + $0x74] sm:$0xf]
        %v910 = vld [vmem:[#allocation9 + $0x78] sm:$0xf]
        %v911 = vld [vmem:[#allocation9 + $0x7c] sm:$0xf]
        %v912 = vld [vmem:[#allocation9 + $0x80] sm:$0xf]
        %v913 = vld [vmem:[#allocation9 + $0x84] sm:$0xf]
        %v914 = vld [vmem:[#allocation9 + $0x88] sm:$0xf]
        %v915 = vld [vmem:[#allocation9 + $0x8c] sm:$0xf]
        %v916 = vld [vmem:[#allocation9 + $0x90] sm:$0xf]
        %v917 = vld [vmem:[#allocation9 + $0x94] sm:$0xf]
        %v918 = vld [vmem:[#allocation9 + $0x98] sm:$0xf]
        %v919 = vld [vmem:[#allocation9 + $0x9c] sm:$0xf]
        %v920 = vld [vmem:[#allocation9 + $0xa0] sm:$0xf]
        %v921 = vld [vmem:[#allocation9 + $0xa4] sm:$0xf]
        %v922 = vld [vmem:[#allocation9 + $0xa8] sm:$0xf]
        %v923 = vld [vmem:[#allocation9 + $0xac] sm:$0xf]
        %v924 = vld [vmem:[#allocation9 + $0xb0] sm:$0xf]
        %v925 = vld [vmem:[#allocation9 + $0xb4] sm:$0xf]
        %v926 = vld [vmem:[#allocation9 + $0xb8] sm:$0xf]
        %v927 = vld [vmem:[#allocation9 + $0xbc] sm:$0xf]
        %v928 = vld [vmem:[#allocation9 + $0xc0] sm:$0xf]
        %v929 = vld [vmem:[#allocation9 + $0xc4] sm:$0xf]
        %v930 = vld [vmem:[#allocation9 + $0xc8] sm:$0xf]
        %v931 = vld [vmem:[#allocation9 + $0xcc] sm:$0xf]
        %v932 = vld [vmem:[#allocation9 + $0xd0] sm:$0xf]
        %v933 = vld [vmem:[#allocation9 + $0xd4] sm:$0xf]
        %v934 = vld [vmem:[#allocation9 + $0xd8] sm:$0xf]
        %v935 = vld [vmem:[#allocation9 + $0xdc] sm:$0xf]
        %v936 = vld [vmem:[#allocation9 + $0xe0] sm:$0xf]
        %v937 = vld [vmem:[#allocation9 + $0xe4] sm:$0xf]
        %v938 = vld [vmem:[#allocation9 + $0xe8] sm:$0xf]
        %v939 = vld [vmem:[#allocation9 + $0xec] sm:$0xf]
        %v940 = vld [vmem:[#allocation9 + $0xf0] sm:$0xf]
        %v941 = vld [vmem:[#allocation9 + $0xf4] sm:$0xf]
        %v942 = vld [vmem:[#allocation9 + $0xf8] sm:$0xf]
        %v943 = vld [vmem:[#allocation9 + $0xfc] sm:$0xf]
        %v944 = vlaneseq
        %v945 = vshrl.u32 %v944, 7
        %v946 = vsub.s32 0, %v945
        %v947 = vrot.slane %v413, %v946
        %v1012 = vunpack.c.l.b16 %v880
        %v1013 = vunpack.c.l.b16 %v881
        %v1014 = vunpack.c.l.b16 %v882
        %v1015 = vunpack.c.l.b16 %v883
        %v1016 = vunpack.c.l.b16 %v884
        %v1017 = vunpack.c.l.b16 %v885
        %v1018 = vunpack.c.l.b16 %v886
        %v1019 = vunpack.c.l.b16 %v887
        %v1020 = vunpack.c.l.b16 %v888
        %v1021 = vunpack.c.l.b16 %v889
        %v1022 = vunpack.c.l.b16 %v890
        %v1023 = vunpack.c.l.b16 %v891
        %v1024 = vunpack.c.l.b16 %v892
        %v1025 = vunpack.c.l.b16 %v893
        %v1026 = vunpack.c.l.b16 %v894
        %v1027 = vunpack.c.l.b16 %v895
        %v1028 = vunpack.c.l.b16 %v896
        %v1029 = vunpack.c.l.b16 %v897
        %v1030 = vunpack.c.l.b16 %v898
        %v1031 = vunpack.c.l.b16 %v899
        %v1032 = vunpack.c.l.b16 %v900
        %v1033 = vunpack.c.l.b16 %v901
        %v1034 = vunpack.c.l.b16 %v902
        %v1035 = vunpack.c.l.b16 %v903
        %v1036 = vunpack.c.l.b16 %v904
        %v1037 = vunpack.c.l.b16 %v905
        %v1038 = vunpack.c.l.b16 %v906
        %v1039 = vunpack.c.l.b16 %v907
        %v1040 = vunpack.c.l.b16 %v908
        %v1041 = vunpack.c.l.b16 %v909
        %v1042 = vunpack.c.l.b16 %v910
        %v1043 = vunpack.c.l.b16 %v911
        %v1044 = vunpack.c.l.b16 %v912
        %v1045 = vunpack.c.l.b16 %v913
        %v1046 = vunpack.c.l.b16 %v914
        %v1047 = vunpack.c.l.b16 %v915
        %v1048 = vunpack.c.l.b16 %v916
        %v1049 = vunpack.c.l.b16 %v917
        %v1050 = vunpack.c.l.b16 %v918
        %v1051 = vunpack.c.l.b16 %v919
        %v1052 = vunpack.c.l.b16 %v920
        %v1053 = vunpack.c.l.b16 %v921
        %v1054 = vunpack.c.l.b16 %v922
        %v1055 = vunpack.c.l.b16 %v923
        %v1056 = vunpack.c.l.b16 %v924
        %v1057 = vunpack.c.l.b16 %v925
        %v1058 = vunpack.c.l.b16 %v926
        %v1059 = vunpack.c.l.b16 %v927
        %v1060 = vunpack.c.l.b16 %v928
        %v1061 = vunpack.c.l.b16 %v929
        %v1062 = vunpack.c.l.b16 %v930
        %v1063 = vunpack.c.l.b16 %v931
        %v1064 = vunpack.c.l.b16 %v932
        %v1065 = vunpack.c.l.b16 %v933
        %v1066 = vunpack.c.l.b16 %v934
        %v1067 = vunpack.c.l.b16 %v935
        %v1068 = vunpack.c.l.b16 %v936
        %v1069 = vunpack.c.l.b16 %v937
        %v1070 = vunpack.c.l.b16 %v938
        %v1071 = vunpack.c.l.b16 %v939
        %v1072 = vunpack.c.l.b16 %v940
        %v1073 = vunpack.c.l.b16 %v941
        %v1074 = vunpack.c.l.b16 %v942
        %v1075 = vunpack.c.l.b16 %v943
        %v1076 = vpack.c.b16 %v1013, %v1012
        %v1077 = vpack.c.b16 %v1015, %v1014
        %v1078 = vpack.c.b16 %v1017, %v1016
        %v1079 = vpack.c.b16 %v1019, %v1018
        %v1080 = vpack.c.b16 %v1021, %v1020
        %v1081 = vpack.c.b16 %v1023, %v1022
        %v1082 = vpack.c.b16 %v1025, %v1024
        %v1083 = vpack.c.b16 %v1027, %v1026
        %v1084 = vpack.c.b16 %v1029, %v1028
        %v1085 = vpack.c.b16 %v1031, %v1030
        %v1086 = vpack.c.b16 %v1033, %v1032
        %v1087 = vpack.c.b16 %v1035, %v1034
        %v1088 = vpack.c.b16 %v1037, %v1036
        %v1089 = vpack.c.b16 %v1039, %v1038
        %v1090 = vpack.c.b16 %v1041, %v1040
        %v1091 = vpack.c.b16 %v1043, %v1042
        %v1092 = vpack.c.b16 %v1045, %v1044
        %v1093 = vpack.c.b16 %v1047, %v1046
        %v1094 = vpack.c.b16 %v1049, %v1048
        %v1095 = vpack.c.b16 %v1051, %v1050
        %v1096 = vpack.c.b16 %v1053, %v1052
        %v1097 = vpack.c.b16 %v1055, %v1054
        %v1098 = vpack.c.b16 %v1057, %v1056
        %v1099 = vpack.c.b16 %v1059, %v1058
        %v1100 = vpack.c.b16 %v1061, %v1060
        %v1101 = vpack.c.b16 %v1063, %v1062
        %v1102 = vpack.c.b16 %v1065, %v1064
        %v1103 = vpack.c.b16 %v1067, %v1066
        %v1104 = vpack.c.b16 %v1069, %v1068
        %v1105 = vpack.c.b16 %v1071, %v1070
        %v1106 = vpack.c.b16 %v1073, %v1072
        %v1107 = vpack.c.b16 %v1075, %v1074
        %1140 = vmatprep.subr.bf16.mxu0 0
        %1141 = vmatpush1.bf16.msra.mxu0 %v1083
        %1142 = vmatprep.subr.bf16.mxu0 0
        %1143 = vmatpush1.bf16.msra.mxu0 %v1082
        %1144 = vmatprep.subr.bf16.mxu0 0
        %1145 = vmatpush1.bf16.msra.mxu0 %v1081
        %1146 = vmatprep.subr.bf16.mxu0 0
        %1147 = vmatpush1.bf16.msra.mxu0 %v1080
        %1148 = vmatprep.subr.bf16.mxu0 0
        %1149 = vmatpush1.bf16.msra.mxu0 %v1079
        %1150 = vmatprep.subr.bf16.mxu0 0
        %1151 = vmatpush1.bf16.msra.mxu0 %v1078
        %1152 = vmatprep.subr.bf16.mxu0 0
        %1153 = vmatpush1.bf16.msra.mxu0 %v1077
        %1154 = vmatprep.subr.bf16.mxu0 0
        %1155 = vmatpush1.bf16.msra.mxu0 %v1076
        %1156 = vmatprep.subr.bf16.mxu0 0
        %1157 = vmatpush2.bf16.msra.mxu0 %v1091
        %1158 = vmatprep.subr.bf16.mxu0 0
        %1159 = vmatpush2.bf16.msra.mxu0 %v1090
        %1160 = vmatprep.subr.bf16.mxu0 0
        %1161 = vmatpush2.bf16.msra.mxu0 %v1089
        %1162 = vmatprep.subr.bf16.mxu0 0
        %1163 = vmatpush2.bf16.msra.mxu0 %v1088
        %1164 = vmatprep.subr.bf16.mxu0 0
        %1165 = vmatpush2.bf16.msra.mxu0 %v1087
        %1166 = vmatprep.subr.bf16.mxu0 0
        %1167 = vmatpush2.bf16.msra.mxu0 %v1086
        %1168 = vmatprep.subr.bf16.mxu0 0
        %1169 = vmatpush2.bf16.msra.mxu0 %v1085
        %1170 = vmatprep.subr.bf16.mxu0 0
        %1171 = vmatpush2.bf16.msra.mxu0 %v1084
        %1172 = vmatprep.mubr.bf16.mxu0 %v869
        %1173 = vmatmul.mubr.bf16.gmra.mxu0 %v868
        %v1174 = vpop.f32.mrf.mxu0
        %v1175 = vadd.f32 %v947, %v1174
        %v1176 = vpop.f32.mrf.mxu0
        %v1177 = vpop.f32.mrf.mxu0
        %v1178 = vadd.f32 %v947, %v1177
        %v1179 = vpop.f32.mrf.mxu0
        %1180 = vmatprep.mubr.bf16.mxu0 %v873
        %1181 = vmatmul.mubr.bf16.gmra.mxu0 %v872
        %v1182 = vpop.f32.mrf.mxu0
        %v1183 = vadd.f32 %v947, %v1182
        %v1184 = vpop.f32.mrf.mxu0
        %v1185 = vpop.f32.mrf.mxu0
        %v1186 = vadd.f32 %v947, %v1185
        %v1187 = vpop.f32.mrf.mxu0
        %1188 = vmatprep.mubr.bf16.mxu0 %v877
        %1189 = vmatmul.mubr.bf16.gmra.mxu0 %v876
        %v1190 = vpop.f32.mrf.mxu0
        %v1191 = vadd.f32 %v947, %v1190
        %v1192 = vpop.f32.mrf.mxu0
        %v1193 = vpop.f32.mrf.mxu0
        %v1194 = vpop.f32.mrf.mxu0
        %1195 = vdwg.mxu0
        %1196 = vmatprep.subr.bf16.mxu0 0
        %1197 = vmatpush1.bf16.msra.mxu0 %v1099
        %1198 = vmatprep.subr.bf16.mxu0 0
        %1199 = vmatpush1.bf16.msra.mxu0 %v1098
        %1200 = vmatprep.subr.bf16.mxu0 0
        %1201 = vmatpush1.bf16.msra.mxu0 %v1097
        %1202 = vmatprep.subr.bf16.mxu0 0
        %1203 = vmatpush1.bf16.msra.mxu0 %v1096
        %1204 = vmatprep.subr.bf16.mxu0 0
        %1205 = vmatpush1.bf16.msra.mxu0 %v1095
        %1206 = vmatprep.subr.bf16.mxu0 0
        %1207 = vmatpush1.bf16.msra.mxu0 %v1094
        %1208 = vmatprep.subr.bf16.mxu0 0
        %1209 = vmatpush1.bf16.msra.mxu0 %v1093
        %1210 = vmatprep.subr.bf16.mxu0 0
        %1211 = vmatpush1.bf16.msra.mxu0 %v1092
        %1212 = vmatprep.subr.bf16.mxu0 0
        %1213 = vmatpush2.bf16.msra.mxu0 %v1107
        %1214 = vmatprep.subr.bf16.mxu0 0
        %1215 = vmatpush2.bf16.msra.mxu0 %v1106
        %1216 = vmatprep.subr.bf16.mxu0 0
        %1217 = vmatpush2.bf16.msra.mxu0 %v1105
        %1218 = vmatprep.subr.bf16.mxu0 0
        %1219 = vmatpush2.bf16.msra.mxu0 %v1104
        %1220 = vmatprep.subr.bf16.mxu0 0
        %1221 = vmatpush2.bf16.msra.mxu0 %v1103
        %1222 = vmatprep.subr.bf16.mxu0 0
        %1223 = vmatpush2.bf16.msra.mxu0 %v1102
        %1224 = vmatprep.subr.bf16.mxu0 0
        %1225 = vmatpush2.bf16.msra.mxu0 %v1101
        %1226 = vmatprep.subr.bf16.mxu0 0
        %1227 = vmatpush2.bf16.msra.mxu0 %v1100
        %1228 = vmatprep.mubr.bf16.mxu0 %v871
        %1229 = vmatmul.mubr.bf16.gmra.mxu0 %v870
        %v1230 = vpop.f32.mrf.mxu0
        %v1231 = vadd.f32 %v1175, %v1230
        %v1232 = vpop.f32.mrf.mxu0
        %v1233 = vpop.f32.mrf.mxu0
        %v1234 = vadd.f32 %v1178, %v1233
        %v1235 = vpop.f32.mrf.mxu0
        %1236 = vmatprep.mubr.bf16.mxu0 %v875
        %1237 = vmatmul.mubr.bf16.gmra.mxu0 %v874
        %v1238 = vpop.f32.mrf.mxu0
        %v1239 = vadd.f32 %v1183, %v1238
        %v1240 = vpop.f32.mrf.mxu0
        %v1241 = vpop.f32.mrf.mxu0
        %v1242 = vadd.f32 %v1186, %v1241
        %v1243 = vpop.f32.mrf.mxu0
        %1244 = vmatprep.mubr.bf16.mxu0 %v879
        %1245 = vmatmul.mubr.bf16.gmra.mxu0 %v878
        %v1246 = vpop.f32.mrf.mxu0
        %v1247 = vadd.f32 %v1191, %v1246
        %v1248 = vpop.f32.mrf.mxu0
        %v1249 = vpop.f32.mrf.mxu0
        %v1250 = vpop.f32.mrf.mxu0
        %1251 = vdwg.mxu0
        %v1252 = vmax.f32 %v1231, 0.0
        %v1253 = vmax.f32 %v1234, 0.0
        %v1254 = vmax.f32 %v1239, 0.0
        %v1255 = vmax.f32 %v1242, 0.0
        %v1256 = vmax.f32 %v1247, 0.0
        %v1257 = vld [vmem:[#allocation4 + $0x2] sm:$0x1]
        %v1258 = vpack.c.bf16 %v408, %v407
        %v1259 = vpack.c.bf16 %v410, %v409
        %v1260 = vpack.c.bf16 %v411, %v411
        %v1261 = vld [vmem:[#allocation10] sm:$0xf]
        %v1262 = vld [vmem:[#allocation10 + $0x4] sm:$0xf]
        %v1263 = vld [vmem:[#allocation10 + $0x8] sm:$0xf]
        %v1264 = vld [vmem:[#allocation10 + $0xc] sm:$0xf]
        %v1265 = vld [vmem:[#allocation10 + $0x10] sm:$0xf]
        %v1266 = vld [vmem:[#allocation10 + $0x14] sm:$0xf]
        %v1267 = vld [vmem:[#allocation10 + $0x18] sm:$0xf]
        %v1268 = vld [vmem:[#allocation10 + $0x1c] sm:$0xf]
        %v1269 = vld [vmem:[#allocation10 + $0x20] sm:$0xf]
        %v1270 = vld [vmem:[#allocation10 + $0x24] sm:$0xf]
        %v1271 = vld [vmem:[#allocation10 + $0x28] sm:$0xf]
        %v1272 = vld [vmem:[#allocation10 + $0x2c] sm:$0xf]
        %v1273 = vld [vmem:[#allocation10 + $0x30] sm:$0xf]
        %v1274 = vld [vmem:[#allocation10 + $0x34] sm:$0xf]
        %v1275 = vld [vmem:[#allocation10 + $0x38] sm:$0xf]
        %v1276 = vld [vmem:[#allocation10 + $0x3c] sm:$0xf]
        %v1277 = vlaneseq
        %v1278 = vshrl.u32 %v1277, 7
        %v1279 = vsub.s32 0, %v1278
        %v1280 = vrot.slane %v1257, %v1279
        %v1297 = vunpack.c.l.b16 %v1261
        %v1298 = vunpack.c.l.b16 %v1262
        %v1299 = vunpack.c.l.b16 %v1263
        %v1300 = vunpack.c.l.b16 %v1264
        %v1301 = vunpack.c.l.b16 %v1265
        %v1302 = vunpack.c.l.b16 %v1266
        %v1303 = vunpack.c.l.b16 %v1267
        %v1304 = vunpack.c.l.b16 %v1268
        %v1305 = vunpack.c.l.b16 %v1269
        %v1306 = vunpack.c.l.b16 %v1270
        %v1307 = vunpack.c.l.b16 %v1271
        %v1308 = vunpack.c.l.b16 %v1272
        %v1309 = vunpack.c.l.b16 %v1273
        %v1310 = vunpack.c.l.b16 %v1274
        %v1311 = vunpack.c.l.b16 %v1275
        %v1312 = vunpack.c.l.b16 %v1276
        %v1313 = vpack.c.b16 %v1298, %v1297
        %v1314 = vpack.c.b16 %v1300, %v1299
        %v1315 = vpack.c.b16 %v1302, %v1301
        %v1316 = vpack.c.b16 %v1304, %v1303
        %v1317 = vpack.c.b16 %v1306, %v1305
        %v1318 = vpack.c.b16 %v1308, %v1307
        %v1319 = vpack.c.b16 %v1310, %v1309
        %v1320 = vpack.c.b16 %v1312, %v1311
        %1329 = vmatprep.subr.bf16.mxu0 0
        %1330 = vmatpush1.bf16.msra.mxu0 %v1320
        %1331 = vmatprep.subr.bf16.mxu0 0
        %1332 = vmatpush1.bf16.msra.mxu0 %v1319
        %1333 = vmatprep.subr.bf16.mxu0 0
        %1334 = vmatpush1.bf16.msra.mxu0 %v1318
        %1335 = vmatprep.subr.bf16.mxu0 0
        %1336 = vmatpush1.bf16.msra.mxu0 %v1317
        %1337 = vmatprep.subr.bf16.mxu0 0
        %1338 = vmatpush1.bf16.msra.mxu0 %v1316
        %1339 = vmatprep.subr.bf16.mxu0 0
        %1340 = vmatpush1.bf16.msra.mxu0 %v1315
        %1341 = vmatprep.subr.bf16.mxu0 0
        %1342 = vmatpush1.bf16.msra.mxu0 %v1314
        %1343 = vmatprep.subr.bf16.mxu0 0
        %1344 = vmatpush1.bf16.msra.mxu0 %v1313
        %1345 = vmatprep.subr.bf16.mxu0 0
        %1346 = vmatpush2.bf16.msra.mxu0 0
        %1347 = vmatprep.subr.bf16.mxu0 0
        %1348 = vmatpush2.bf16.msra.mxu0 0
        %1349 = vmatprep.subr.bf16.mxu0 0
        %1350 = vmatpush2.bf16.msra.mxu0 0
        %1351 = vmatprep.subr.bf16.mxu0 0
        %1352 = vmatpush2.bf16.msra.mxu0 0
        %1353 = vmatprep.subr.bf16.mxu0 0
        %1354 = vmatpush2.bf16.msra.mxu0 0
        %1355 = vmatprep.subr.bf16.mxu0 0
        %1356 = vmatpush2.bf16.msra.mxu0 0
        %1357 = vmatprep.subr.bf16.mxu0 0
        %1358 = vmatpush2.bf16.msra.mxu0 0
        %1359 = vmatprep.subr.bf16.mxu0 0
        %1360 = vmatpush2.bf16.msra.mxu0 0
        %1361 = vmatprep.mubr.bf16.mxu0 0
        %1362 = vmatmul.mubr.bf16.gmra.mxu0 %v1258
        %v1363 = vpop.f32.mrf.mxu0
        %v1364 = vadd.f32 %v1280, %v1363
        %v1365 = vpop.f32.mrf.mxu0
        %v1366 = vpop.f32.mrf.mxu0
        %v1367 = vadd.f32 %v1280, %v1366
        %v1368 = vpop.f32.mrf.mxu0
        %1369 = vmatprep.mubr.bf16.mxu0 0
        %1370 = vmatmul.mubr.bf16.gmra.mxu0 %v1259
        %v1371 = vpop.f32.mrf.mxu0
        %v1372 = vadd.f32 %v1280, %v1371
        %v1373 = vpop.f32.mrf.mxu0
        %v1374 = vpop.f32.mrf.mxu0
        %v1375 = vadd.f32 %v1280, %v1374
        %v1376 = vpop.f32.mrf.mxu0
        %1377 = vmatprep.mubr.bf16.mxu0 0
        %1378 = vmatmul.mubr.bf16.gmra.mxu0 %v1260
        %v1379 = vpop.f32.mrf.mxu0
        %v1380 = vadd.f32 %v1280, %v1379
        %v1381 = vpop.f32.mrf.mxu0
        %v1382 = vpop.f32.mrf.mxu0
        %v1383 = vpop.f32.mrf.mxu0
        %1384 = vdwg.mxu0
        %v1385 = vadd.f32 %v1252, %v1364
        %v1386 = vadd.f32 %v1253, %v1367
        %v1387 = vadd.f32 %v1254, %v1372
        %v1388 = vadd.f32 %v1255, %v1375
        %v1389 = vadd.f32 %v1256, %v1380
        %v1390 = vmax.f32 %v1385, 0.0
        %v1391 = vmax.f32 %v1386, 0.0
        %v1392 = vmax.f32 %v1387, 0.0
        %v1393 = vmax.f32 %v1388, 0.0
        %v1394 = vmax.f32 %v1389, 0.0
        %v1395 = vsel %vm833, %v1390, 0.0
        %v1396 = vsel %vm834, %v1391, 0.0
        %v1397 = vsel %vm835, %v1392, 0.0
        %v1398 = vsel %vm836, %v1393, 0.0
        %v1399 = vsel %vm837, %v1394, 0.0
        %v1400 = vld [vmem:[#allocation4 + $0x3] sm:$0x1]
        %v1401 = vld [vmem:[#allocation4 + $0x4] sm:$0x1]
        %1402 = vst [vmem:[#allocation2 + $0x8] sm:$0xff] %v1395
        %1403 = vst [vmem:[#allocation2 + $0x10] sm:$0xff] %v1396
        %1404 = vst [vmem:[#allocation2 + $0x18] sm:$0xff] %v1397
        %1405 = vst [vmem:[#allocation2 + $0x20] sm:$0xff] %v1398
        %1406 = vst [vmem:[#allocation2 + $0x28] sm:$0xff] %v1399
        %v1407 = vld [vmem:[#allocation2 + $0x8] sm:$0xff]
        %v1408 = vld [vmem:[#allocation2 + $0x10] sm:$0xff]
        %v1409 = vld [vmem:[#allocation2 + $0x18] sm:$0xff]
        %v1410 = vld [vmem:[#allocation2 + $0x20] sm:$0xff]
        %v1411 = vld [vmem:[#allocation2 + $0x28] sm:$0xff]
        %v1412 = vld [vmem:[#allocation2 + $0x6] sm:$0xff]
        %v1413 = vld [vmem:[#allocation2 + $0xe] sm:$0xff]
        %v1414 = vld [vmem:[#allocation2 + $0x16] sm:$0xff]
        %v1415 = vld [vmem:[#allocation2 + $0x1e] sm:$0xff]
        %v1416 = vld [vmem:[#allocation2 + $0x26] sm:$0xff]
        %v1417 = vld [vmem:[#allocation2 + $0x4] sm:$0xff]
        %v1418 = vld [vmem:[#allocation2 + $0xc] sm:$0xff]
        %v1419 = vld [vmem:[#allocation2 + $0x14] sm:$0xff]
        %v1420 = vld [vmem:[#allocation2 + $0x1c] sm:$0xff]
        %v1421 = vld [vmem:[#allocation2 + $0x24] sm:$0xff]
        %v1422 = vld [vmem:[#allocation2 + $0x2] sm:$0xff]
        %v1423 = vld [vmem:[#allocation2 + $0xa] sm:$0xff]
        %v1424 = vld [vmem:[#allocation2 + $0x12] sm:$0xff]
        %v1425 = vld [vmem:[#allocation2 + $0x1a] sm:$0xff]
        %v1426 = vld [vmem:[#allocation2 + $0x22] sm:$0xff]
        %v1427 = vpack.c.bf16 %v1408, %v1407
        %v1428 = vpack.c.bf16 %v1413, %v1412
        %v1429 = vpack.c.bf16 %v1418, %v1417
        %v1430 = vpack.c.bf16 %v1423, %v1422
        %v1431 = vpack.c.bf16 %v1410, %v1409
        %v1432 = vpack.c.bf16 %v1415, %v1414
        %v1433 = vpack.c.bf16 %v1420, %v1419
        %v1434 = vpack.c.bf16 %v1425, %v1424
        %v1435 = vpack.c.bf16 %v1411, %v1411
        %v1436 = vpack.c.bf16 %v1416, %v1416
        %v1437 = vpack.c.bf16 %v1421, %v1421
        %v1438 = vpack.c.bf16 %v1426, %v1426
        %v1439 = vld [vmem:[#allocation12] sm:$0xf]
        %v1440 = vld [vmem:[#allocation12 + $0x4] sm:$0xf]
        %v1441 = vld [vmem:[#allocation12 + $0x8] sm:$0xf]
        %v1442 = vld [vmem:[#allocation12 + $0xc] sm:$0xf]
        %v1443 = vld [vmem:[#allocation12 + $0x10] sm:$0xf]
        %v1444 = vld [vmem:[#allocation12 + $0x14] sm:$0xf]
        %v1445 = vld [vmem:[#allocation12 + $0x18] sm:$0xf]
        %v1446 = vld [vmem:[#allocation12 + $0x1c] sm:$0xf]
        %v1447 = vld [vmem:[#allocation12 + $0x20] sm:$0xf]
        %v1448 = vld [vmem:[#allocation12 + $0x24] sm:$0xf]
        %v1449 = vld [vmem:[#allocation12 + $0x28] sm:$0xf]
        %v1450 = vld [vmem:[#allocation12 + $0x2c] sm:$0xf]
        %v1451 = vld [vmem:[#allocation12 + $0x30] sm:$0xf]
        %v1452 = vld [vmem:[#allocation12 + $0x34] sm:$0xf]
        %v1453 = vld [vmem:[#allocation12 + $0x38] sm:$0xf]
        %v1454 = vld [vmem:[#allocation12 + $0x3c] sm:$0xf]
        %v1455 = vld [vmem:[#allocation12 + $0x40] sm:$0xf]
        %v1456 = vld [vmem:[#allocation12 + $0x44] sm:$0xf]
        %v1457 = vld [vmem:[#allocation12 + $0x48] sm:$0xf]
        %v1458 = vld [vmem:[#allocation12 + $0x4c] sm:$0xf]
        %v1459 = vld [vmem:[#allocation12 + $0x50] sm:$0xf]
        %v1460 = vld [vmem:[#allocation12 + $0x54] sm:$0xf]
        %v1461 = vld [vmem:[#allocation12 + $0x58] sm:$0xf]
        %v1462 = vld [vmem:[#allocation12 + $0x5c] sm:$0xf]
        %v1463 = vld [vmem:[#allocation12 + $0x60] sm:$0xf]
        %v1464 = vld [vmem:[#allocation12 + $0x64] sm:$0xf]
        %v1465 = vld [vmem:[#allocation12 + $0x68] sm:$0xf]
        %v1466 = vld [vmem:[#allocation12 + $0x6c] sm:$0xf]
        %v1467 = vld [vmem:[#allocation12 + $0x70] sm:$0xf]
        %v1468 = vld [vmem:[#allocation12 + $0x74] sm:$0xf]
        %v1469 = vld [vmem:[#allocation12 + $0x78] sm:$0xf]
        %v1470 = vld [vmem:[#allocation12 + $0x7c] sm:$0xf]
        %v1471 = vld [vmem:[#allocation12 + $0x80] sm:$0xf]
        %v1472 = vld [vmem:[#allocation12 + $0x84] sm:$0xf]
        %v1473 = vld [vmem:[#allocation12 + $0x88] sm:$0xf]
        %v1474 = vld [vmem:[#allocation12 + $0x8c] sm:$0xf]
        %v1475 = vld [vmem:[#allocation12 + $0x90] sm:$0xf]
        %v1476 = vld [vmem:[#allocation12 + $0x94] sm:$0xf]
        %v1477 = vld [vmem:[#allocation12 + $0x98] sm:$0xf]
        %v1478 = vld [vmem:[#allocation12 + $0x9c] sm:$0xf]
        %v1479 = vld [vmem:[#allocation12 + $0xa0] sm:$0xf]
        %v1480 = vld [vmem:[#allocation12 + $0xa4] sm:$0xf]
        %v1481 = vld [vmem:[#allocation12 + $0xa8] sm:$0xf]
        %v1482 = vld [vmem:[#allocation12 + $0xac] sm:$0xf]
        %v1483 = vld [vmem:[#allocation12 + $0xb0] sm:$0xf]
        %v1484 = vld [vmem:[#allocation12 + $0xb4] sm:$0xf]
        %v1485 = vld [vmem:[#allocation12 + $0xb8] sm:$0xf]
        %v1486 = vld [vmem:[#allocation12 + $0xbc] sm:$0xf]
        %v1487 = vld [vmem:[#allocation12 + $0xc0] sm:$0xf]
        %v1488 = vld [vmem:[#allocation12 + $0xc4] sm:$0xf]
        %v1489 = vld [vmem:[#allocation12 + $0xc8] sm:$0xf]
        %v1490 = vld [vmem:[#allocation12 + $0xcc] sm:$0xf]
        %v1491 = vld [vmem:[#allocation12 + $0xd0] sm:$0xf]
        %v1492 = vld [vmem:[#allocation12 + $0xd4] sm:$0xf]
        %v1493 = vld [vmem:[#allocation12 + $0xd8] sm:$0xf]
        %v1494 = vld [vmem:[#allocation12 + $0xdc] sm:$0xf]
        %v1495 = vld [vmem:[#allocation12 + $0xe0] sm:$0xf]
        %v1496 = vld [vmem:[#allocation12 + $0xe4] sm:$0xf]
        %v1497 = vld [vmem:[#allocation12 + $0xe8] sm:$0xf]
        %v1498 = vld [vmem:[#allocation12 + $0xec] sm:$0xf]
        %v1499 = vld [vmem:[#allocation12 + $0xf0] sm:$0xf]
        %v1500 = vld [vmem:[#allocation12 + $0xf4] sm:$0xf]
        %v1501 = vld [vmem:[#allocation12 + $0xf8] sm:$0xf]
        %v1502 = vld [vmem:[#allocation12 + $0xfc] sm:$0xf]
        %v1503 = vlaneseq
        %v1504 = vshrl.u32 %v1503, 7
        %v1505 = vsub.s32 0, %v1504
        %v1506 = vrot.slane %v1400, %v1505
        %v1571 = vunpack.c.l.b16 %v1439
        %v1572 = vunpack.c.l.b16 %v1440
        %v1573 = vunpack.c.l.b16 %v1441
        %v1574 = vunpack.c.l.b16 %v1442
        %v1575 = vunpack.c.l.b16 %v1443
        %v1576 = vunpack.c.l.b16 %v1444
        %v1577 = vunpack.c.l.b16 %v1445
        %v1578 = vunpack.c.l.b16 %v1446
        %v1579 = vunpack.c.l.b16 %v1447
        %v1580 = vunpack.c.l.b16 %v1448
        %v1581 = vunpack.c.l.b16 %v1449
        %v1582 = vunpack.c.l.b16 %v1450
        %v1583 = vunpack.c.l.b16 %v1451
        %v1584 = vunpack.c.l.b16 %v1452
        %v1585 = vunpack.c.l.b16 %v1453
        %v1586 = vunpack.c.l.b16 %v1454
        %v1587 = vunpack.c.l.b16 %v1455
        %v1588 = vunpack.c.l.b16 %v1456
        %v1589 = vunpack.c.l.b16 %v1457
        %v1590 = vunpack.c.l.b16 %v1458
        %v1591 = vunpack.c.l.b16 %v1459
        %v1592 = vunpack.c.l.b16 %v1460
        %v1593 = vunpack.c.l.b16 %v1461
        %v1594 = vunpack.c.l.b16 %v1462
        %v1595 = vunpack.c.l.b16 %v1463
        %v1596 = vunpack.c.l.b16 %v1464
        %v1597 = vunpack.c.l.b16 %v1465
        %v1598 = vunpack.c.l.b16 %v1466
        %v1599 = vunpack.c.l.b16 %v1467
        %v1600 = vunpack.c.l.b16 %v1468
        %v1601 = vunpack.c.l.b16 %v1469
        %v1602 = vunpack.c.l.b16 %v1470
        %v1603 = vunpack.c.l.b16 %v1471
        %v1604 = vunpack.c.l.b16 %v1472
        %v1605 = vunpack.c.l.b16 %v1473
        %v1606 = vunpack.c.l.b16 %v1474
        %v1607 = vunpack.c.l.b16 %v1475
        %v1608 = vunpack.c.l.b16 %v1476
        %v1609 = vunpack.c.l.b16 %v1477
        %v1610 = vunpack.c.l.b16 %v1478
        %v1611 = vunpack.c.l.b16 %v1479
        %v1612 = vunpack.c.l.b16 %v1480
        %v1613 = vunpack.c.l.b16 %v1481
        %v1614 = vunpack.c.l.b16 %v1482
        %v1615 = vunpack.c.l.b16 %v1483
        %v1616 = vunpack.c.l.b16 %v1484
        %v1617 = vunpack.c.l.b16 %v1485
        %v1618 = vunpack.c.l.b16 %v1486
        %v1619 = vunpack.c.l.b16 %v1487
        %v1620 = vunpack.c.l.b16 %v1488
        %v1621 = vunpack.c.l.b16 %v1489
        %v1622 = vunpack.c.l.b16 %v1490
        %v1623 = vunpack.c.l.b16 %v1491
        %v1624 = vunpack.c.l.b16 %v1492
        %v1625 = vunpack.c.l.b16 %v1493
        %v1626 = vunpack.c.l.b16 %v1494
        %v1627 = vunpack.c.l.b16 %v1495
        %v1628 = vunpack.c.l.b16 %v1496
        %v1629 = vunpack.c.l.b16 %v1497
        %v1630 = vunpack.c.l.b16 %v1498
        %v1631 = vunpack.c.l.b16 %v1499
        %v1632 = vunpack.c.l.b16 %v1500
        %v1633 = vunpack.c.l.b16 %v1501
        %v1634 = vunpack.c.l.b16 %v1502
        %v1635 = vpack.c.b16 %v1572, %v1571
        %v1636 = vpack.c.b16 %v1574, %v1573
        %v1637 = vpack.c.b16 %v1576, %v1575
        %v1638 = vpack.c.b16 %v1578, %v1577
        %v1639 = vpack.c.b16 %v1580, %v1579
        %v1640 = vpack.c.b16 %v1582, %v1581
        %v1641 = vpack.c.b16 %v1584, %v1583
        %v1642 = vpack.c.b16 %v1586, %v1585
        %v1643 = vpack.c.b16 %v1588, %v1587
        %v1644 = vpack.c.b16 %v1590, %v1589
        %v1645 = vpack.c.b16 %v1592, %v1591
        %v1646 = vpack.c.b16 %v1594, %v1593
        %v1647 = vpack.c.b16 %v1596, %v1595
        %v1648 = vpack.c.b16 %v1598, %v1597
        %v1649 = vpack.c.b16 %v1600, %v1599
        %v1650 = vpack.c.b16 %v1602, %v1601
        %v1651 = vpack.c.b16 %v1604, %v1603
        %v1652 = vpack.c.b16 %v1606, %v1605
        %v1653 = vpack.c.b16 %v1608, %v1607
        %v1654 = vpack.c.b16 %v1610, %v1609
        %v1655 = vpack.c.b16 %v1612, %v1611
        %v1656 = vpack.c.b16 %v1614, %v1613
        %v1657 = vpack.c.b16 %v1616, %v1615
        %v1658 = vpack.c.b16 %v1618, %v1617
        %v1659 = vpack.c.b16 %v1620, %v1619
        %v1660 = vpack.c.b16 %v1622, %v1621
        %v1661 = vpack.c.b16 %v1624, %v1623
        %v1662 = vpack.c.b16 %v1626, %v1625
        %v1663 = vpack.c.b16 %v1628, %v1627
        %v1664 = vpack.c.b16 %v1630, %v1629
        %v1665 = vpack.c.b16 %v1632, %v1631
        %v1666 = vpack.c.b16 %v1634, %v1633
        %1699 = vmatprep.subr.bf16.mxu0 0
        %1700 = vmatpush1.bf16.msra.mxu0 %v1642
        %1701 = vmatprep.subr.bf16.mxu0 0
        %1702 = vmatpush1.bf16.msra.mxu0 %v1641
        %1703 = vmatprep.subr.bf16.mxu0 0
        %1704 = vmatpush1.bf16.msra.mxu0 %v1640
        %1705 = vmatprep.subr.bf16.mxu0 0
        %1706 = vmatpush1.bf16.msra.mxu0 %v1639
        %1707 = vmatprep.subr.bf16.mxu0 0
        %1708 = vmatpush1.bf16.msra.mxu0 %v1638
        %1709 = vmatprep.subr.bf16.mxu0 0
        %1710 = vmatpush1.bf16.msra.mxu0 %v1637
        %1711 = vmatprep.subr.bf16.mxu0 0
        %1712 = vmatpush1.bf16.msra.mxu0 %v1636
        %1713 = vmatprep.subr.bf16.mxu0 0
        %1714 = vmatpush1.bf16.msra.mxu0 %v1635
        %1715 = vmatprep.subr.bf16.mxu0 0
        %1716 = vmatpush2.bf16.msra.mxu0 %v1650
        %1717 = vmatprep.subr.bf16.mxu0 0
        %1718 = vmatpush2.bf16.msra.mxu0 %v1649
        %1719 = vmatprep.subr.bf16.mxu0 0
        %1720 = vmatpush2.bf16.msra.mxu0 %v1648
        %1721 = vmatprep.subr.bf16.mxu0 0
        %1722 = vmatpush2.bf16.msra.mxu0 %v1647
        %1723 = vmatprep.subr.bf16.mxu0 0
        %1724 = vmatpush2.bf16.msra.mxu0 %v1646
        %1725 = vmatprep.subr.bf16.mxu0 0
        %1726 = vmatpush2.bf16.msra.mxu0 %v1645
        %1727 = vmatprep.subr.bf16.mxu0 0
        %1728 = vmatpush2.bf16.msra.mxu0 %v1644
        %1729 = vmatprep.subr.bf16.mxu0 0
        %1730 = vmatpush2.bf16.msra.mxu0 %v1643
        %1731 = vmatprep.mubr.bf16.mxu0 %v1428
        %1732 = vmatmul.mubr.bf16.gmra.mxu0 %v1427
        %v1733 = vpop.f32.mrf.mxu0
        %v1734 = vadd.f32 %v1506, %v1733
        %v1735 = vpop.f32.mrf.mxu0
        %v1736 = vpop.f32.mrf.mxu0
        %v1737 = vadd.f32 %v1506, %v1736
        %v1738 = vpop.f32.mrf.mxu0
        %1739 = vmatprep.mubr.bf16.mxu0 %v1432
        %1740 = vmatmul.mubr.bf16.gmra.mxu0 %v1431
        %v1741 = vpop.f32.mrf.mxu0
        %v1742 = vadd.f32 %v1506, %v1741
        %v1743 = vpop.f32.mrf.mxu0
        %v1744 = vpop.f32.mrf.mxu0
        %v1745 = vadd.f32 %v1506, %v1744
        %v1746 = vpop.f32.mrf.mxu0
        %1747 = vmatprep.mubr.bf16.mxu0 %v1436
        %1748 = vmatmul.mubr.bf16.gmra.mxu0 %v1435
        %v1749 = vpop.f32.mrf.mxu0
        %v1750 = vadd.f32 %v1506, %v1749
        %v1751 = vpop.f32.mrf.mxu0
        %v1752 = vpop.f32.mrf.mxu0
        %v1753 = vpop.f32.mrf.mxu0
        %1754 = vdwg.mxu0
        %1755 = vmatprep.subr.bf16.mxu0 0
        %1756 = vmatpush1.bf16.msra.mxu0 %v1658
        %1757 = vmatprep.subr.bf16.mxu0 0
        %1758 = vmatpush1.bf16.msra.mxu0 %v1657
        %1759 = vmatprep.subr.bf16.mxu0 0
        %1760 = vmatpush1.bf16.msra.mxu0 %v1656
        %1761 = vmatprep.subr.bf16.mxu0 0
        %1762 = vmatpush1.bf16.msra.mxu0 %v1655
        %1763 = vmatprep.subr.bf16.mxu0 0
        %1764 = vmatpush1.bf16.msra.mxu0 %v1654
        %1765 = vmatprep.subr.bf16.mxu0 0
        %1766 = vmatpush1.bf16.msra.mxu0 %v1653
        %1767 = vmatprep.subr.bf16.mxu0 0
        %1768 = vmatpush1.bf16.msra.mxu0 %v1652
        %1769 = vmatprep.subr.bf16.mxu0 0
        %1770 = vmatpush1.bf16.msra.mxu0 %v1651
        %1771 = vmatprep.subr.bf16.mxu0 0
        %1772 = vmatpush2.bf16.msra.mxu0 %v1666
        %1773 = vmatprep.subr.bf16.mxu0 0
        %1774 = vmatpush2.bf16.msra.mxu0 %v1665
        %1775 = vmatprep.subr.bf16.mxu0 0
        %1776 = vmatpush2.bf16.msra.mxu0 %v1664
        %1777 = vmatprep.subr.bf16.mxu0 0
        %1778 = vmatpush2.bf16.msra.mxu0 %v1663
        %1779 = vmatprep.subr.bf16.mxu0 0
        %1780 = vmatpush2.bf16.msra.mxu0 %v1662
        %1781 = vmatprep.subr.bf16.mxu0 0
        %1782 = vmatpush2.bf16.msra.mxu0 %v1661
        %1783 = vmatprep.subr.bf16.mxu0 0
        %1784 = vmatpush2.bf16.msra.mxu0 %v1660
        %1785 = vmatprep.subr.bf16.mxu0 0
        %1786 = vmatpush2.bf16.msra.mxu0 %v1659
        %1787 = vmatprep.mubr.bf16.mxu0 %v1430
        %1788 = vmatmul.mubr.bf16.gmra.mxu0 %v1429
        %v1789 = vpop.f32.mrf.mxu0
        %v1790 = vadd.f32 %v1734, %v1789
        %v1791 = vpop.f32.mrf.mxu0
        %v1792 = vpop.f32.mrf.mxu0
        %v1793 = vadd.f32 %v1737, %v1792
        %v1794 = vpop.f32.mrf.mxu0
        %1795 = vmatprep.mubr.bf16.mxu0 %v1434
        %1796 = vmatmul.mubr.bf16.gmra.mxu0 %v1433
        %v1797 = vpop.f32.mrf.mxu0
        %v1798 = vadd.f32 %v1742, %v1797
        %v1799 = vpop.f32.mrf.mxu0
        %v1800 = vpop.f32.mrf.mxu0
        %v1801 = vadd.f32 %v1745, %v1800
        %v1802 = vpop.f32.mrf.mxu0
        %1803 = vmatprep.mubr.bf16.mxu0 %v1438
        %1804 = vmatmul.mubr.bf16.gmra.mxu0 %v1437
        %v1805 = vpop.f32.mrf.mxu0
        %v1806 = vadd.f32 %v1750, %v1805
        %v1807 = vpop.f32.mrf.mxu0
        %v1808 = vpop.f32.mrf.mxu0
        %v1809 = vpop.f32.mrf.mxu0
        %1810 = vdwg.mxu0
        %v1811 = vmax.f32 %v1790, 0.0
        %v1812 = vmax.f32 %v1793, 0.0
        %v1813 = vmax.f32 %v1798, 0.0
        %v1814 = vmax.f32 %v1801, 0.0
        %v1815 = vmax.f32 %v1806, 0.0
        %v1816 = vsel %vm833, %v1811, 0.0
        %v1817 = vsel %vm834, %v1812, 0.0
        %v1818 = vsel %vm835, %v1813, 0.0
        %v1819 = vsel %vm836, %v1814, 0.0
        %v1820 = vsel %vm837, %v1815, 0.0
        %1821 = vst [vmem:[#allocation2 + $0x8] sm:$0xff] %v1816
        %1822 = vst [vmem:[#allocation2 + $0x10] sm:$0xff] %v1817
        %1823 = vst [vmem:[#allocation2 + $0x18] sm:$0xff] %v1818
        %1824 = vst [vmem:[#allocation2 + $0x20] sm:$0xff] %v1819
        %1825 = vst [vmem:[#allocation2 + $0x28] sm:$0xff] %v1820
        %v1826 = vld [vmem:[#allocation2 + $0x8] sm:$0xff]
        %v1827 = vld [vmem:[#allocation2 + $0x10] sm:$0xff]
        %v1828 = vld [vmem:[#allocation2 + $0x18] sm:$0xff]
        %v1829 = vld [vmem:[#allocation2 + $0x20] sm:$0xff]
        %v1830 = vld [vmem:[#allocation2 + $0x28] sm:$0xff]
        %v1831 = vld [vmem:[#allocation2 + $0x6] sm:$0xff]
        %v1832 = vld [vmem:[#allocation2 + $0xe] sm:$0xff]
        %v1833 = vld [vmem:[#allocation2 + $0x16] sm:$0xff]
        %v1834 = vld [vmem:[#allocation2 + $0x1e] sm:$0xff]
        %v1835 = vld [vmem:[#allocation2 + $0x26] sm:$0xff]
        %v1836 = vld [vmem:[#allocation2 + $0x4] sm:$0xff]
        %v1837 = vld [vmem:[#allocation2 + $0xc] sm:$0xff]
        %v1838 = vld [vmem:[#allocation2 + $0x14] sm:$0xff]
        %v1839 = vld [vmem:[#allocation2 + $0x1c] sm:$0xff]
        %v1840 = vld [vmem:[#allocation2 + $0x24] sm:$0xff]
        %v1841 = vld [vmem:[#allocation2 + $0x2] sm:$0xff]
        %v1842 = vld [vmem:[#allocation2 + $0xa] sm:$0xff]
        %v1843 = vld [vmem:[#allocation2 + $0x12] sm:$0xff]
        %v1844 = vld [vmem:[#allocation2 + $0x1a] sm:$0xff]
        %v1845 = vld [vmem:[#allocation2 + $0x22] sm:$0xff]
        %v1846 = vpack.c.bf16 %v1827, %v1826
        %v1847 = vpack.c.bf16 %v1832, %v1831
        %v1848 = vpack.c.bf16 %v1837, %v1836
        %v1849 = vpack.c.bf16 %v1842, %v1841
        %v1850 = vpack.c.bf16 %v1829, %v1828
        %v1851 = vpack.c.bf16 %v1834, %v1833
        %v1852 = vpack.c.bf16 %v1839, %v1838
        %v1853 = vpack.c.bf16 %v1844, %v1843
        %v1854 = vpack.c.bf16 %v1830, %v1830
        %v1855 = vpack.c.bf16 %v1835, %v1835
        %v1856 = vpack.c.bf16 %v1840, %v1840
        %v1857 = vpack.c.bf16 %v1845, %v1845
        %v1858 = vld [vmem:[#allocation13] sm:$0xf]
        %v1859 = vld [vmem:[#allocation13 + $0x4] sm:$0xf]
        %v1860 = vld [vmem:[#allocation13 + $0x8] sm:$0xf]
        %v1861 = vld [vmem:[#allocation13 + $0xc] sm:$0xf]
        %v1862 = vld [vmem:[#allocation13 + $0x10] sm:$0xf]
        %v1863 = vld [vmem:[#allocation13 + $0x14] sm:$0xf]
        %v1864 = vld [vmem:[#allocation13 + $0x18] sm:$0xf]
        %v1865 = vld [vmem:[#allocation13 + $0x1c] sm:$0xf]
        %v1866 = vld [vmem:[#allocation13 + $0x20] sm:$0xf]
        %v1867 = vld [vmem:[#allocation13 + $0x24] sm:$0xf]
        %v1868 = vld [vmem:[#allocation13 + $0x28] sm:$0xf]
        %v1869 = vld [vmem:[#allocation13 + $0x2c] sm:$0xf]
        %v1870 = vld [vmem:[#allocation13 + $0x30] sm:$0xf]
        %v1871 = vld [vmem:[#allocation13 + $0x34] sm:$0xf]
        %v1872 = vld [vmem:[#allocation13 + $0x38] sm:$0xf]
        %v1873 = vld [vmem:[#allocation13 + $0x3c] sm:$0xf]
        %v1874 = vld [vmem:[#allocation13 + $0x40] sm:$0xf]
        %v1875 = vld [vmem:[#allocation13 + $0x44] sm:$0xf]
        %v1876 = vld [vmem:[#allocation13 + $0x48] sm:$0xf]
        %v1877 = vld [vmem:[#allocation13 + $0x4c] sm:$0xf]
        %v1878 = vld [vmem:[#allocation13 + $0x50] sm:$0xf]
        %v1879 = vld [vmem:[#allocation13 + $0x54] sm:$0xf]
        %v1880 = vld [vmem:[#allocation13 + $0x58] sm:$0xf]
        %v1881 = vld [vmem:[#allocation13 + $0x5c] sm:$0xf]
        %v1882 = vld [vmem:[#allocation13 + $0x60] sm:$0xf]
        %v1883 = vld [vmem:[#allocation13 + $0x64] sm:$0xf]
        %v1884 = vld [vmem:[#allocation13 + $0x68] sm:$0xf]
        %v1885 = vld [vmem:[#allocation13 + $0x6c] sm:$0xf]
        %v1886 = vld [vmem:[#allocation13 + $0x70] sm:$0xf]
        %v1887 = vld [vmem:[#allocation13 + $0x74] sm:$0xf]
        %v1888 = vld [vmem:[#allocation13 + $0x78] sm:$0xf]
        %v1889 = vld [vmem:[#allocation13 + $0x7c] sm:$0xf]
        %v1890 = vld [vmem:[#allocation13 + $0x80] sm:$0xf]
        %v1891 = vld [vmem:[#allocation13 + $0x84] sm:$0xf]
        %v1892 = vld [vmem:[#allocation13 + $0x88] sm:$0xf]
        %v1893 = vld [vmem:[#allocation13 + $0x8c] sm:$0xf]
        %v1894 = vld [vmem:[#allocation13 + $0x90] sm:$0xf]
        %v1895 = vld [vmem:[#allocation13 + $0x94] sm:$0xf]
        %v1896 = vld [vmem:[#allocation13 + $0x98] sm:$0xf]
        %v1897 = vld [vmem:[#allocation13 + $0x9c] sm:$0xf]
        %v1898 = vld [vmem:[#allocation13 + $0xa0] sm:$0xf]
        %v1899 = vld [vmem:[#allocation13 + $0xa4] sm:$0xf]
        %v1900 = vld [vmem:[#allocation13 + $0xa8] sm:$0xf]
        %v1901 = vld [vmem:[#allocation13 + $0xac] sm:$0xf]
        %v1902 = vld [vmem:[#allocation13 + $0xb0] sm:$0xf]
        %v1903 = vld [vmem:[#allocation13 + $0xb4] sm:$0xf]
        %v1904 = vld [vmem:[#allocation13 + $0xb8] sm:$0xf]
        %v1905 = vld [vmem:[#allocation13 + $0xbc] sm:$0xf]
        %v1906 = vld [vmem:[#allocation13 + $0xc0] sm:$0xf]
        %v1907 = vld [vmem:[#allocation13 + $0xc4] sm:$0xf]
        %v1908 = vld [vmem:[#allocation13 + $0xc8] sm:$0xf]
        %v1909 = vld [vmem:[#allocation13 + $0xcc] sm:$0xf]
        %v1910 = vld [vmem:[#allocation13 + $0xd0] sm:$0xf]
        %v1911 = vld [vmem:[#allocation13 + $0xd4] sm:$0xf]
        %v1912 = vld [vmem:[#allocation13 + $0xd8] sm:$0xf]
        %v1913 = vld [vmem:[#allocation13 + $0xdc] sm:$0xf]
        %v1914 = vld [vmem:[#allocation13 + $0xe0] sm:$0xf]
        %v1915 = vld [vmem:[#allocation13 + $0xe4] sm:$0xf]
        %v1916 = vld [vmem:[#allocation13 + $0xe8] sm:$0xf]
        %v1917 = vld [vmem:[#allocation13 + $0xec] sm:$0xf]
        %v1918 = vld [vmem:[#allocation13 + $0xf0] sm:$0xf]
        %v1919 = vld [vmem:[#allocation13 + $0xf4] sm:$0xf]
        %v1920 = vld [vmem:[#allocation13 + $0xf8] sm:$0xf]
        %v1921 = vld [vmem:[#allocation13 + $0xfc] sm:$0xf]
        %v1922 = vlaneseq
        %v1923 = vshrl.u32 %v1922, 7
        %v1924 = vsub.s32 0, %v1923
        %v1925 = vrot.slane %v1401, %v1924
        %v1990 = vunpack.c.l.b16 %v1858
        %v1991 = vunpack.c.l.b16 %v1859
        %v1992 = vunpack.c.l.b16 %v1860
        %v1993 = vunpack.c.l.b16 %v1861
        %v1994 = vunpack.c.l.b16 %v1862
        %v1995 = vunpack.c.l.b16 %v1863
        %v1996 = vunpack.c.l.b16 %v1864
        %v1997 = vunpack.c.l.b16 %v1865
        %v1998 = vunpack.c.l.b16 %v1866
        %v1999 = vunpack.c.l.b16 %v1867
        %v2000 = vunpack.c.l.b16 %v1868
        %v2001 = vunpack.c.l.b16 %v1869
        %v2002 = vunpack.c.l.b16 %v1870
        %v2003 = vunpack.c.l.b16 %v1871
        %v2004 = vunpack.c.l.b16 %v1872
        %v2005 = vunpack.c.l.b16 %v1873
        %v2006 = vunpack.c.l.b16 %v1874
        %v2007 = vunpack.c.l.b16 %v1875
        %v2008 = vunpack.c.l.b16 %v1876
        %v2009 = vunpack.c.l.b16 %v1877
        %v2010 = vunpack.c.l.b16 %v1878
        %v2011 = vunpack.c.l.b16 %v1879
        %v2012 = vunpack.c.l.b16 %v1880
        %v2013 = vunpack.c.l.b16 %v1881
        %v2014 = vunpack.c.l.b16 %v1882
        %v2015 = vunpack.c.l.b16 %v1883
        %v2016 = vunpack.c.l.b16 %v1884
        %v2017 = vunpack.c.l.b16 %v1885
        %v2018 = vunpack.c.l.b16 %v1886
        %v2019 = vunpack.c.l.b16 %v1887
        %v2020 = vunpack.c.l.b16 %v1888
        %v2021 = vunpack.c.l.b16 %v1889
        %v2022 = vunpack.c.l.b16 %v1890
        %v2023 = vunpack.c.l.b16 %v1891
        %v2024 = vunpack.c.l.b16 %v1892
        %v2025 = vunpack.c.l.b16 %v1893
        %v2026 = vunpack.c.l.b16 %v1894
        %v2027 = vunpack.c.l.b16 %v1895
        %v2028 = vunpack.c.l.b16 %v1896
        %v2029 = vunpack.c.l.b16 %v1897
        %v2030 = vunpack.c.l.b16 %v1898
        %v2031 = vunpack.c.l.b16 %v1899
        %v2032 = vunpack.c.l.b16 %v1900
        %v2033 = vunpack.c.l.b16 %v1901
        %v2034 = vunpack.c.l.b16 %v1902
        %v2035 = vunpack.c.l.b16 %v1903
        %v2036 = vunpack.c.l.b16 %v1904
        %v2037 = vunpack.c.l.b16 %v1905
        %v2038 = vunpack.c.l.b16 %v1906
        %v2039 = vunpack.c.l.b16 %v1907
        %v2040 = vunpack.c.l.b16 %v1908
        %v2041 = vunpack.c.l.b16 %v1909
        %v2042 = vunpack.c.l.b16 %v1910
        %v2043 = vunpack.c.l.b16 %v1911
        %v2044 = vunpack.c.l.b16 %v1912
        %v2045 = vunpack.c.l.b16 %v1913
        %v2046 = vunpack.c.l.b16 %v1914
        %v2047 = vunpack.c.l.b16 %v1915
        %v2048 = vunpack.c.l.b16 %v1916
        %v2049 = vunpack.c.l.b16 %v1917
        %v2050 = vunpack.c.l.b16 %v1918
        %v2051 = vunpack.c.l.b16 %v1919
        %v2052 = vunpack.c.l.b16 %v1920
        %v2053 = vunpack.c.l.b16 %v1921
        %v2054 = vpack.c.b16 %v1991, %v1990
        %v2055 = vpack.c.b16 %v1993, %v1992
        %v2056 = vpack.c.b16 %v1995, %v1994
        %v2057 = vpack.c.b16 %v1997, %v1996
        %v2058 = vpack.c.b16 %v1999, %v1998
        %v2059 = vpack.c.b16 %v2001, %v2000
        %v2060 = vpack.c.b16 %v2003, %v2002
        %v2061 = vpack.c.b16 %v2005, %v2004
        %v2062 = vpack.c.b16 %v2007, %v2006
        %v2063 = vpack.c.b16 %v2009, %v2008
        %v2064 = vpack.c.b16 %v2011, %v2010
        %v2065 = vpack.c.b16 %v2013, %v2012
        %v2066 = vpack.c.b16 %v2015, %v2014
        %v2067 = vpack.c.b16 %v2017, %v2016
        %v2068 = vpack.c.b16 %v2019, %v2018
        %v2069 = vpack.c.b16 %v2021, %v2020
        %v2070 = vpack.c.b16 %v2023, %v2022
        %v2071 = vpack.c.b16 %v2025, %v2024
        %v2072 = vpack.c.b16 %v2027, %v2026
        %v2073 = vpack.c.b16 %v2029, %v2028
        %v2074 = vpack.c.b16 %v2031, %v2030
        %v2075 = vpack.c.b16 %v2033, %v2032
        %v2076 = vpack.c.b16 %v2035, %v2034
        %v2077 = vpack.c.b16 %v2037, %v2036
        %v2078 = vpack.c.b16 %v2039, %v2038
        %v2079 = vpack.c.b16 %v2041, %v2040
        %v2080 = vpack.c.b16 %v2043, %v2042
        %v2081 = vpack.c.b16 %v2045, %v2044
        %v2082 = vpack.c.b16 %v2047, %v2046
        %v2083 = vpack.c.b16 %v2049, %v2048
        %v2084 = vpack.c.b16 %v2051, %v2050
        %v2085 = vpack.c.b16 %v2053, %v2052
        %2118 = vmatprep.subr.bf16.mxu0 0
        %2119 = vmatpush1.bf16.msra.mxu0 %v2061
        %2120 = vmatprep.subr.bf16.mxu0 0
        %2121 = vmatpush1.bf16.msra.mxu0 %v2060
        %2122 = vmatprep.subr.bf16.mxu0 0
        %2123 = vmatpush1.bf16.msra.mxu0 %v2059
        %2124 = vmatprep.subr.bf16.mxu0 0
        %2125 = vmatpush1.bf16.msra.mxu0 %v2058
        %2126 = vmatprep.subr.bf16.mxu0 0
        %2127 = vmatpush1.bf16.msra.mxu0 %v2057
        %2128 = vmatprep.subr.bf16.mxu0 0
        %2129 = vmatpush1.bf16.msra.mxu0 %v2056
        %2130 = vmatprep.subr.bf16.mxu0 0
        %2131 = vmatpush1.bf16.msra.mxu0 %v2055
        %2132 = vmatprep.subr.bf16.mxu0 0
        %2133 = vmatpush1.bf16.msra.mxu0 %v2054
        %2134 = vmatprep.subr.bf16.mxu0 0
        %2135 = vmatpush2.bf16.msra.mxu0 %v2069
        %2136 = vmatprep.subr.bf16.mxu0 0
        %2137 = vmatpush2.bf16.msra.mxu0 %v2068
        %2138 = vmatprep.subr.bf16.mxu0 0
        %2139 = vmatpush2.bf16.msra.mxu0 %v2067
        %2140 = vmatprep.subr.bf16.mxu0 0
        %2141 = vmatpush2.bf16.msra.mxu0 %v2066
        %2142 = vmatprep.subr.bf16.mxu0 0
        %2143 = vmatpush2.bf16.msra.mxu0 %v2065
        %2144 = vmatprep.subr.bf16.mxu0 0
        %2145 = vmatpush2.bf16.msra.mxu0 %v2064
        %2146 = vmatprep.subr.bf16.mxu0 0
        %2147 = vmatpush2.bf16.msra.mxu0 %v2063
        %2148 = vmatprep.subr.bf16.mxu0 0
        %2149 = vmatpush2.bf16.msra.mxu0 %v2062
        %2150 = vmatprep.mubr.bf16.mxu0 %v1847
        %2151 = vmatmul.mubr.bf16.gmra.mxu0 %v1846
        %v2152 = vpop.f32.mrf.mxu0
        %v2153 = vpop.f32.mrf.mxu0
        %v2154 = vpop.f32.mrf.mxu0
        %v2155 = vpop.f32.mrf.mxu0
        %2156 = vmatprep.mubr.bf16.mxu0 %v1851
        %2157 = vmatmul.mubr.bf16.gmra.mxu0 %v1850
        %v2158 = vpop.f32.mrf.mxu0
        %v2159 = vpop.f32.mrf.mxu0
        %v2160 = vpop.f32.mrf.mxu0
        %v2161 = vadd.f32 %v1925, %v2160
        %v2162 = vpop.f32.mrf.mxu0
        %2163 = vmatprep.mubr.bf16.mxu0 %v1855
        %2164 = vmatmul.mubr.bf16.gmra.mxu0 %v1854
        %v2165 = vpop.f32.mrf.mxu0
        %v2166 = vadd.f32 %v1925, %v2165
        %v2167 = vpop.f32.mrf.mxu0
        %v2168 = vpop.f32.mrf.mxu0
        %v2169 = vpop.f32.mrf.mxu0
        %2170 = vdwg.mxu0
        %2171 = vmatprep.subr.bf16.mxu0 0
        %2172 = vmatpush1.bf16.msra.mxu0 %v2077
        %2173 = vmatprep.subr.bf16.mxu0 0
        %2174 = vmatpush1.bf16.msra.mxu0 %v2076
        %2175 = vmatprep.subr.bf16.mxu0 0
        %2176 = vmatpush1.bf16.msra.mxu0 %v2075
        %2177 = vmatprep.subr.bf16.mxu0 0
        %2178 = vmatpush1.bf16.msra.mxu0 %v2074
        %2179 = vmatprep.subr.bf16.mxu0 0
        %2180 = vmatpush1.bf16.msra.mxu0 %v2073
        %2181 = vmatprep.subr.bf16.mxu0 0
        %2182 = vmatpush1.bf16.msra.mxu0 %v2072
        %2183 = vmatprep.subr.bf16.mxu0 0
        %2184 = vmatpush1.bf16.msra.mxu0 %v2071
        %2185 = vmatprep.subr.bf16.mxu0 0
        %2186 = vmatpush1.bf16.msra.mxu0 %v2070
        %2187 = vmatprep.subr.bf16.mxu0 0
        %2188 = vmatpush2.bf16.msra.mxu0 %v2085
        %2189 = vmatprep.subr.bf16.mxu0 0
        %2190 = vmatpush2.bf16.msra.mxu0 %v2084
        %2191 = vmatprep.subr.bf16.mxu0 0
        %2192 = vmatpush2.bf16.msra.mxu0 %v2083
        %2193 = vmatprep.subr.bf16.mxu0 0
        %2194 = vmatpush2.bf16.msra.mxu0 %v2082
        %2195 = vmatprep.subr.bf16.mxu0 0
        %2196 = vmatpush2.bf16.msra.mxu0 %v2081
        %2197 = vmatprep.subr.bf16.mxu0 0
        %2198 = vmatpush2.bf16.msra.mxu0 %v2080
        %2199 = vmatprep.subr.bf16.mxu0 0
        %2200 = vmatpush2.bf16.msra.mxu0 %v2079
        %2201 = vmatprep.subr.bf16.mxu0 0
        %2202 = vmatpush2.bf16.msra.mxu0 %v2078
        %2203 = vmatprep.mubr.bf16.mxu0 %v1849
        %2204 = vmatmul.mubr.bf16.gmra.mxu0 %v1848
        %v2205 = vpop.f32.mrf.mxu0
        %v2206 = vpop.f32.mrf.mxu0
        %v2207 = vpop.f32.mrf.mxu0
        %v2208 = vpop.f32.mrf.mxu0
        %2209 = vmatprep.mubr.bf16.mxu0 %v1853
        %2210 = vmatmul.mubr.bf16.gmra.mxu0 %v1852
        %v2211 = vpop.f32.mrf.mxu0
        %v2212 = vpop.f32.mrf.mxu0
        %v2213 = vpop.f32.mrf.mxu0
        %v2214 = vadd.f32 %v2161, %v2213
        %v2215 = vpop.f32.mrf.mxu0
        %2216 = vmatprep.mubr.bf16.mxu0 %v1857
        %2217 = vmatmul.mubr.bf16.gmra.mxu0 %v1856
        %v2218 = vpop.f32.mrf.mxu0
        %v2219 = vadd.f32 %v2166, %v2218
        %v2220 = vpop.f32.mrf.mxu0
        %v2221 = vpop.f32.mrf.mxu0
        %v2222 = vpop.f32.mrf.mxu0
        %2223 = vdwg.mxu0
        %v2224 = vmax.f32 %v2214, 0.0
        %v2225 = vmax.f32 %v2219, 0.0
        %v2226 = vld [vmem:[#allocation4 + $0x5] sm:$0x1]
        %v2227 = vpack.c.bf16 %v1396, %v1395
        %v2228 = vpack.c.bf16 %v1398, %v1397
        %v2229 = vpack.c.bf16 %v1399, %v1399
        %v2230 = vld [vmem:[#allocation15] sm:$0xf]
        %v2231 = vld [vmem:[#allocation15 + $0x4] sm:$0xf]
        %v2232 = vld [vmem:[#allocation15 + $0x8] sm:$0xf]
        %v2233 = vld [vmem:[#allocation15 + $0xc] sm:$0xf]
        %v2234 = vld [vmem:[#allocation15 + $0x10] sm:$0xf]
        %v2235 = vld [vmem:[#allocation15 + $0x14] sm:$0xf]
        %v2236 = vld [vmem:[#allocation15 + $0x18] sm:$0xf]
        %v2237 = vld [vmem:[#allocation15 + $0x1c] sm:$0xf]
        %v2238 = vld [vmem:[#allocation15 + $0x20] sm:$0xf]
        %v2239 = vld [vmem:[#allocation15 + $0x24] sm:$0xf]
        %v2240 = vld [vmem:[#allocation15 + $0x28] sm:$0xf]
        %v2241 = vld [vmem:[#allocation15 + $0x2c] sm:$0xf]
        %v2242 = vld [vmem:[#allocation15 + $0x30] sm:$0xf]
        %v2243 = vld [vmem:[#allocation15 + $0x34] sm:$0xf]
        %v2244 = vld [vmem:[#allocation15 + $0x38] sm:$0xf]
        %v2245 = vld [vmem:[#allocation15 + $0x3c] sm:$0xf]
        %v2246 = vlaneseq
        %v2247 = vshrl.u32 %v2246, 7
        %v2248 = vsub.s32 0, %v2247
        %v2249 = vrot.slane %v2226, %v2248
        %v2266 = vunpack.c.l.b16 %v2230
        %v2267 = vunpack.c.l.b16 %v2231
        %v2268 = vunpack.c.l.b16 %v2232
        %v2269 = vunpack.c.l.b16 %v2233
        %v2270 = vunpack.c.l.b16 %v2234
        %v2271 = vunpack.c.l.b16 %v2235
        %v2272 = vunpack.c.l.b16 %v2236
        %v2273 = vunpack.c.l.b16 %v2237
        %v2274 = vunpack.c.l.b16 %v2238
        %v2275 = vunpack.c.l.b16 %v2239
        %v2276 = vunpack.c.l.b16 %v2240
        %v2277 = vunpack.c.l.b16 %v2241
        %v2278 = vunpack.c.l.b16 %v2242
        %v2279 = vunpack.c.l.b16 %v2243
        %v2280 = vunpack.c.l.b16 %v2244
        %v2281 = vunpack.c.l.b16 %v2245
        %v2282 = vpack.c.b16 %v2267, %v2266
        %v2283 = vpack.c.b16 %v2269, %v2268
        %v2284 = vpack.c.b16 %v2271, %v2270
        %v2285 = vpack.c.b16 %v2273, %v2272
        %v2286 = vpack.c.b16 %v2275, %v2274
        %v2287 = vpack.c.b16 %v2277, %v2276
        %v2288 = vpack.c.b16 %v2279, %v2278
        %v2289 = vpack.c.b16 %v2281, %v2280
        %2298 = vmatprep.subr.bf16.mxu0 0
        %2299 = vmatpush1.bf16.msra.mxu0 %v2289
        %2300 = vmatprep.subr.bf16.mxu0 0
        %2301 = vmatpush1.bf16.msra.mxu0 %v2288
        %2302 = vmatprep.subr.bf16.mxu0 0
        %2303 = vmatpush1.bf16.msra.mxu0 %v2287
        %2304 = vmatprep.subr.bf16.mxu0 0
        %2305 = vmatpush1.bf16.msra.mxu0 %v2286
        %2306 = vmatprep.subr.bf16.mxu0 0
        %2307 = vmatpush1.bf16.msra.mxu0 %v2285
        %2308 = vmatprep.subr.bf16.mxu0 0
        %2309 = vmatpush1.bf16.msra.mxu0 %v2284
        %2310 = vmatprep.subr.bf16.mxu0 0
        %2311 = vmatpush1.bf16.msra.mxu0 %v2283
        %2312 = vmatprep.subr.bf16.mxu0 0
        %2313 = vmatpush1.bf16.msra.mxu0 %v2282
        %2314 = vmatprep.subr.bf16.mxu0 0
        %2315 = vmatpush2.bf16.msra.mxu0 0
        %2316 = vmatprep.subr.bf16.mxu0 0
        %2317 = vmatpush2.bf16.msra.mxu0 0
        %2318 = vmatprep.subr.bf16.mxu0 0
        %2319 = vmatpush2.bf16.msra.mxu0 0
        %2320 = vmatprep.subr.bf16.mxu0 0
        %2321 = vmatpush2.bf16.msra.mxu0 0
        %2322 = vmatprep.subr.bf16.mxu0 0
        %2323 = vmatpush2.bf16.msra.mxu0 0
        %2324 = vmatprep.subr.bf16.mxu0 0
        %2325 = vmatpush2.bf16.msra.mxu0 0
        %2326 = vmatprep.subr.bf16.mxu0 0
        %2327 = vmatpush2.bf16.msra.mxu0 0
        %2328 = vmatprep.subr.bf16.mxu0 0
        %2329 = vmatpush2.bf16.msra.mxu0 0
        %2330 = vmatprep.mubr.bf16.mxu0 0
        %2331 = vmatmul.mubr.bf16.gmra.mxu0 %v2227
        %v2332 = vpop.f32.mrf.mxu0
        %v2333 = vpop.f32.mrf.mxu0
        %v2334 = vpop.f32.mrf.mxu0
        %v2335 = vpop.f32.mrf.mxu0
        %2336 = vmatprep.mubr.bf16.mxu0 0
        %2337 = vmatmul.mubr.bf16.gmra.mxu0 %v2228
        %v2338 = vpop.f32.mrf.mxu0
        %v2339 = vpop.f32.mrf.mxu0
        %v2340 = vpop.f32.mrf.mxu0
        %v2341 = vadd.f32 %v2249, %v2340
        %v2342 = vpop.f32.mrf.mxu0
        %2343 = vmatprep.mubr.bf16.mxu0 0
        %2344 = vmatmul.mubr.bf16.gmra.mxu0 %v2229
        %v2345 = vpop.f32.mrf.mxu0
        %v2346 = vadd.f32 %v2249, %v2345
        %v2347 = vpop.f32.mrf.mxu0
        %v2348 = vpop.f32.mrf.mxu0
        %v2349 = vpop.f32.mrf.mxu0
        %2350 = vdwg.mxu0
        %v2351 = vadd.f32 %v2224, %v2341
        %v2352 = vadd.f32 %v2225, %v2346
        %v2353 = vmax.f32 %v2351, 0.0
        %v2354 = vmax.f32 %v2352, 0.0
        %v2355 = vsel %vm836, %v2353, 0.0
        %v2356 = vsel %vm837, %v2354, 0.0
        %2357 = vst [vmem:[%s371] sm:$0xff] %v2355
        %2358 = vst [vmem:[%s371 + $0x8] sm:$0xff] %v2356
        %s2359 = sand.u32 %s195, 1
        %s2360 = scalar_lea.sflag [#allocation6], %s2359
        %s2361 = sand.u32 %s195, 1
        %s2362 = smul.addr %s2361, 16
        %s2363 = scalar_lea.vmem [#allocation16], %s2362
        // Predicated region
        $region82: #{tpu_custom_call.1} parent=47 // pred_check
          %p2364 = pneg %p205
        $region83: #{tpu_custom_call.1} parent=47 // pred_check_branch
          %2366 = sbr.rel (%p2364) target = $region85
        $region84: #{tpu_custom_call.1} parent=47 // pred_region
          %s2367 = smul.u32 2, %s31
          %s2369 = ssub.s32 256, 256
          %2370 = vsyncadd %s2360, %s2369
          %s2371 = smul.addr %s30, 2
          %s2372 = sadd.s32 %s2367, %s2371
          %s2373 = smul.addr %s2372, 128
          %s2374 = scalar_lea.hbm %s8, %s2373
          %s2375 = sshll.u32 %s2363, 4
          %s2376 = int_to_ptr.vmem [resolvable:$true] %s2375
          %2381 = dma.vmem_to_hbm [thread:$0]  %s2376, 256, %s2374, %s2360, 128, 128, 8
        $region85: #{tpu_custom_call.1} parent=47 // pred_fallthru
          _
      $region48: #{tpu_custom_call.1} parent=5 // pred_fallthru
        _
      %p2382 = scmp.le.s32.totalorder 2, %s21
      // Predicated region
      $region86: #{tpu_custom_call.1} parent=5 // pred_check
        %p2383 = pneg %p2382
      $region87: #{tpu_custom_call.1} parent=5 // pred_check_branch
        %2385 = sbr.rel (%p2383) target = $region89
      $region88: #{tpu_custom_call.1} parent=5 // pred_region
        %s2386 = ssub.s32 %s21, 2
        // Predicated region
        $region90: #{tpu_custom_call.1} parent=88 // pred_check
          %p2387 = pneg %p211
        $region91: #{tpu_custom_call.1} parent=88 // pred_check_branch
          %2389 = sbr.rel (%p2387) target = $region93
        $region92: #{tpu_custom_call.1} parent=88 // pred_region
          %s2390 = sand.u32 %s196, 1
          %s2391 = scalar_lea.sflag [#allocation6], %s2390
          %s2392 = sand.u32 %s196, 1
          %s2393 = smul.addr %s2392, 16
          %s2394 = scalar_lea.vmem [#allocation16], %s2393
          %2395 = dma.done %s2391, 256
        $region93: #{tpu_custom_call.1} parent=88 // pred_fallthru
          _
      $region89: #{tpu_custom_call.1} parent=5 // pred_fallthru
        _
    $region6: #{tpu_custom_call.1} parent=1 // loop_footer
      %s25 = sadd.s32 1, %s21
    $region7: #{tpu_custom_call.1} parent=1 // loop_footer_branch
      %20 = sbr.rel target = $region3
    $region8: #{tpu_custom_call.1} parent=1 // loop_exit
      _
    %2396 = vsyncpa [#allocation5], 1
    %s2397 = scalar_lea.sflag [#allocation5], 1
    %2398 = vsyncpa %s2397, 1
    %2399 = vsyncpa [#allocation8], 1
    %2400 = vsyncpa [#allocation11], 1
    %2401 = vsyncpa [#allocation14], 1
    %2402 = vsyncpa [#allocation6], 1
    %s2403 = scalar_lea.sflag [#allocation6], 1
    %2404 = vsyncpa %s2403, 1

</llo_original>
